<compile_context>
chip_gen: v5e
topology: v5e:2x2
jax: 0.10.0
libtpu: 0.0.40
codegen_flags: <defaults>
</compile_context>

<pallas_src>
import functools

import jax
import jax.numpy as jnp
from jax.experimental import pallas as pl
from jax.experimental.pallas import tpu as pltpu


# -----------------------------------------------------------------------------
# Pallas kernel: full multi-layer LSTM recurrence + final Linear, in one call.
# Everything (weights, state) is VMEM/register resident; no grid, no scratch.
# -----------------------------------------------------------------------------
def decoder_kernel(num_layers, hidden_size, seq_len,
                   h0_ref, c0_ref,      # (L, B, H)  f32
                   w_hh_ref,            # (L, H, 4H) bf16  recurrent weights (g-cols x2)
                   w_ih_ref,            # (max(L-1,1), H, 4H) bf16  input weights, layers>=1
                   b_ref,               # (L, B, 4H) f32   b_ih+b_hh, pre-broadcast (g-cols x2)
                   w_lin_ref,           # (H, O) bf16      pre-transposed Linear weight
                   b_lin_ref,           # (B, O) f32       pre-broadcast Linear bias
                   out_ref):            # (B, O) f32
    L = num_layers
    H = hidden_size
    f32 = jnp.float32
    cdt = w_hh_ref.dtype          # bf16 compute dtype for MXU operands

    # --- Hoist all loop-invariant loads out of the recurrence (read once). ---
    w_hh = [w_hh_ref[l] for l in range(L)]
    w_ih = [w_ih_ref[l - 1] for l in range(1, L)]
    bias = [b_ref[l] for l in range(L)]           # already (B, 4H): no in-loop broadcast

    # --- Register-carried recurrent state (tiny: L x (B,H) tiles, f32). ---
    h = [h0_ref[l] for l in range(L)]
    c = [c0_ref[l] for l in range(L)]

    def lstm_cell(gates, c_prev):
        # g-gate pre-activations were doubled in the wrapper, so ONE full-vreg sigmoid
        # covers all four gates; tanh(g) = 2*sigmoid(2g) - 1 is a cheap VPU fixup.
        s = jax.nn.sigmoid(gates)
        i_g = s[:, 0 * H:1 * H]
        f_g = s[:, 1 * H:2 * H]
        g_g = 2.0 * s[:, 2 * H:3 * H] - 1.0       # == tanh of the original g pre-activation
        o_g = s[:, 3 * H:4 * H]
        c_new = f_g * c_prev + i_g * g_g
        h_new = o_g * jnp.tanh(c_new)
        return h_new, c_new

    # x_pipe[l] holds the output of layer l-1 for the time step layer l consumes next.
    x_pipe = [None] * L

    # --- Wavefront over (time, layer): fully static unroll, seq_len + L - 1 macro steps.
    #     At macro-step s, layer l (active when 0 <= s-l < seq_len) processes time t = s-l.
    for s in range(seq_len + L - 1):
        active = [l for l in range(L) if 0 <= s - l < seq_len]

        # 1) All gate matmuls of this macro step first: they only depend on the PREVIOUS
        #    macro step's state, so they are mutually independent and pipeline on the MXU.
        gates = {}
        for l in active:
            g = jnp.dot(h[l].astype(cdt), w_hh[l], preferred_element_type=f32) + bias[l]
            if l > 0:
                # Layer-0 LSTM input is identically zero -> its input projection is dropped.
                g = g + jnp.dot(x_pipe[l].astype(cdt), w_ih[l - 1],
                                preferred_element_type=f32)
            gates[l] = g

        # 2) All cell nonlinearities (independent across layers -> EUP/VPU pipeline).
        for l in active:
            h[l], c[l] = lstm_cell(gates[l], c[l])

        # 3) Hand each layer's fresh output to the layer above for the NEXT macro step.
        for l in active:
            if l + 1 < L:
                x_pipe[l + 1] = h[l]

    # Linear(output)[:, -1, :]  ==  Linear(h_T of last layer)
    out_ref[...] = (
        jnp.dot(h[L - 1].astype(cdt), w_lin_ref[...], preferred_element_type=f32)
        + b_lin_ref[...]
    )


def decoder_forward(h0, c0, w_ih, w_hh, b_ih, b_hh, w_lin, b_lin, output_size):
    """h0, c0: (L, B, H). w_ih/w_hh: (L, 4H, H) PyTorch layout (feature_size == H)."""
    L, B, H = h0.shape
    O = output_size
    seq_len = output_size          # the module decodes exactly `output_size` zero-input steps
    f32, bf16 = jnp.float32, jnp.bfloat16

    # Double the g-gate (cell-candidate) pre-activation columns so the kernel recovers
    # tanh(g) from a single sigmoid over the whole (B, 4H) gates tile.
    gscale = jnp.concatenate([jnp.ones((2 * H,), f32),
                              2.0 * jnp.ones((H,), f32),
                              jnp.ones((H,), f32)])

    # Recurrent weights for ALL layers, pre-transposed to (H, 4H); bf16 MXU operands.
    w_hh_t = (jnp.transpose(w_hh, (0, 2, 1)).astype(f32) * gscale).astype(bf16)   # (L,H,4H)

    # Input weights for layers >= 1 (layer 0's LSTM input is always zero -> dropped).
    if L > 1:
        w_ih_t = (jnp.transpose(w_ih[1:], (0, 2, 1)).astype(f32)
                  * gscale).astype(bf16)                                           # (L-1,H,4H)
    else:
        w_ih_t = jnp.zeros((1, H, 4 * H), bf16)   # dummy, never read when L == 1

    # Biases pre-broadcast to (B, 4H) per layer: keeps broadcast_in_dim out of the kernel.
    b = jnp.broadcast_to(((b_ih + b_hh).astype(f32) * gscale)[:, None, :],
                         (L, B, 4 * H))                                            # (L,B,4H)

    w_lin_t = w_lin.T.astype(bf16)                                                 # (H, O)
    b_lin_b = jnp.broadcast_to(b_lin.astype(f32)[None, :], (B, O))                 # (B, O)

    kernel = functools.partial(decoder_kernel, L, H, seq_len)
    vmem = pl.BlockSpec(memory_space=pltpu.MemorySpace.VMEM)

    return pl.pallas_call(
        kernel,
        out_shape=jax.ShapeDtypeStruct((B, O), f32),
        in_specs=[vmem] * 7,
        out_specs=vmem,
    )(h0.astype(f32), c0.astype(f32), w_hh_t, w_ih_t, b, w_lin_t, b_lin_b)


# -----------------------------------------------------------------------------
# Pure-JAX reference (mirrors torch.nn.LSTM + Linear exactly, in f32).
# -----------------------------------------------------------------------------
def decoder_reference(h0, c0, w_ih, w_hh, b_ih, b_hh, w_lin, b_lin, output_size):
    L, B, H = h0.shape
    h = [h0[l] for l in range(L)]
    c = [c0[l] for l in range(L)]
    for _ in range(output_size):
        x_in = jnp.zeros((B, H), jnp.float32)
        for l in range(L):
            gates = x_in @ w_ih[l].T + h[l] @ w_hh[l].T + b_ih[l] + b_hh[l]
            i_g = jax.nn.sigmoid(gates[:, 0 * H:1 * H])
            f_g = jax.nn.sigmoid(gates[:, 1 * H:2 * H])
            g_g = jnp.tanh(gates[:, 2 * H:3 * H])
            o_g = jax.nn.sigmoid(gates[:, 3 * H:4 * H])
            c[l] = f_g * c[l] + i_g * g_g
            h[l] = o_g * jnp.tanh(c[l])
            x_in = h[l]
    return h[L - 1] @ w_lin.T + b_lin


if __name__ == "__main__":
    # Small shapes consistent with the module's forward:
    #   feature_size == hidden_size (required for x=zeros(..., hidden) to feed the LSTM)
    feature_size = 32
    hidden_size = 32
    num_layers = 2
    output_size = 8   # also the decoded sequence length
    batch = 8

    key = jax.random.PRNGKey(0)
    keys = jax.random.split(key, 10)
    k = 1.0 / jnp.sqrt(hidden_size)

    # Deterministic synthetic parameters (PyTorch nn.LSTM / nn.Linear shapes).
    w_ih = jax.random.uniform(keys[0], (num_layers, 4 * hidden_size, hidden_size),
                              minval=-k, maxval=k, dtype=jnp.float32)
    w_hh = jax.random.uniform(keys[1], (num_layers, 4 * hidden_size, hidden_size),
                              minval=-k, maxval=k, dtype=jnp.float32)
    b_ih = jax.random.uniform(keys[2], (num_layers, 4 * hidden_size),
                              minval=-k, maxval=k, dtype=jnp.float32)
    b_hh = jax.random.uniform(keys[3], (num_layers, 4 * hidden_size),
                              minval=-k, maxval=k, dtype=jnp.float32)
    w_lin = jax.random.uniform(keys[4], (output_size, hidden_size),
                               minval=-k, maxval=k, dtype=jnp.float32)
    b_lin = jax.random.uniform(keys[5], (output_size,),
                               minval=-k, maxval=k, dtype=jnp.float32)

    # Example initial states (h_0, c_0): (num_layers, batch, hidden_size).
    h0 = jax.random.normal(keys[6], (num_layers, batch, hidden_size), dtype=jnp.float32)
    c0 = jax.random.normal(keys[7], (num_layers, batch, hidden_size), dtype=jnp.float32)

    out = decoder_forward(h0, c0, w_ih, w_hh, b_ih, b_hh, w_lin, b_lin, output_size)
    out = jax.block_until_ready(out)

    ref = decoder_reference(h0, c0, w_ih, w_hh, b_ih, b_hh, w_lin, b_lin, output_size)
    assert out.shape == (batch, output_size)
    # bf16 MXU operands (f32 accumulation) -> standard bf16 tolerance.
    assert jnp.allclose(out, ref, atol=2e-2, rtol=2e-2), (
        f"max abs err {jnp.max(jnp.abs(out - ref))}")

    print("KERNEL_OK")
</pallas_src>

<mosaic_0001>
module attributes {stable_mosaic.version = 11 : i64} {
  func.func @decoder_kernel(%arg0: memref<2x8x32xf32, #tpu.memory_space<vmem>>, %arg1: memref<2x8x32xf32, #tpu.memory_space<vmem>>, %arg2: memref<2x32x128xbf16, #tpu.memory_space<vmem>>, %arg3: memref<1x32x128xbf16, #tpu.memory_space<vmem>>, %arg4: memref<2x8x128xf32, #tpu.memory_space<vmem>>, %arg5: memref<32x8xbf16, #tpu.memory_space<vmem>>, %arg6: memref<8x8xf32, #tpu.memory_space<vmem>>, %arg7: memref<8x8xf32, #tpu.memory_space<vmem>>) attributes {dimension_semantics = [], scalar_prefetch = 0 : i64, scratch_operands = 0 : i64, tpu.core_type = #tpu.core_type<tc>} {
    %c0 = arith.constant 0 : index
    %c0_0 = arith.constant 0 : index
    %c0_1 = arith.constant 0 : index
    %0 = vector.load %arg2[%c0, %c0_0, %c0_1] : memref<2x32x128xbf16, #tpu.memory_space<vmem>>, vector<1x32x128xbf16>
    %1 = vector.shape_cast %0 : vector<1x32x128xbf16> to vector<32x128xbf16>
    %c1 = arith.constant 1 : index
    %c0_2 = arith.constant 0 : index
    %c0_3 = arith.constant 0 : index
    %2 = vector.load %arg2[%c1, %c0_2, %c0_3] : memref<2x32x128xbf16, #tpu.memory_space<vmem>>, vector<1x32x128xbf16>
    %3 = vector.shape_cast %2 : vector<1x32x128xbf16> to vector<32x128xbf16>
    %c0_4 = arith.constant 0 : index
    %c0_5 = arith.constant 0 : index
    %c0_6 = arith.constant 0 : index
    %4 = vector.load %arg3[%c0_4, %c0_5, %c0_6] : memref<1x32x128xbf16, #tpu.memory_space<vmem>>, vector<1x32x128xbf16>
    %5 = vector.shape_cast %4 : vector<1x32x128xbf16> to vector<32x128xbf16>
    %c0_7 = arith.constant 0 : index
    %c0_8 = arith.constant 0 : index
    %c0_9 = arith.constant 0 : index
    %6 = vector.load %arg4[%c0_7, %c0_8, %c0_9] : memref<2x8x128xf32, #tpu.memory_space<vmem>>, vector<1x8x128xf32>
    %7 = vector.shape_cast %6 : vector<1x8x128xf32> to vector<8x128xf32>
    %c1_10 = arith.constant 1 : index
    %c0_11 = arith.constant 0 : index
    %c0_12 = arith.constant 0 : index
    %8 = vector.load %arg4[%c1_10, %c0_11, %c0_12] : memref<2x8x128xf32, #tpu.memory_space<vmem>>, vector<1x8x128xf32>
    %9 = vector.shape_cast %8 : vector<1x8x128xf32> to vector<8x128xf32>
    %c0_13 = arith.constant 0 : index
    %c0_14 = arith.constant 0 : index
    %c0_15 = arith.constant 0 : index
    %10 = vector.load %arg0[%c0_13, %c0_14, %c0_15] : memref<2x8x32xf32, #tpu.memory_space<vmem>>, vector<1x8x32xf32>
    %11 = vector.shape_cast %10 : vector<1x8x32xf32> to vector<8x32xf32>
    %c1_16 = arith.constant 1 : index
    %c0_17 = arith.constant 0 : index
    %c0_18 = arith.constant 0 : index
    %12 = vector.load %arg0[%c1_16, %c0_17, %c0_18] : memref<2x8x32xf32, #tpu.memory_space<vmem>>, vector<1x8x32xf32>
    %13 = vector.shape_cast %12 : vector<1x8x32xf32> to vector<8x32xf32>
    %c0_19 = arith.constant 0 : index
    %c0_20 = arith.constant 0 : index
    %c0_21 = arith.constant 0 : index
    %14 = vector.load %arg1[%c0_19, %c0_20, %c0_21] : memref<2x8x32xf32, #tpu.memory_space<vmem>>, vector<1x8x32xf32>
    %15 = vector.shape_cast %14 : vector<1x8x32xf32> to vector<8x32xf32>
    %c1_22 = arith.constant 1 : index
    %c0_23 = arith.constant 0 : index
    %c0_24 = arith.constant 0 : index
    %16 = vector.load %arg1[%c1_22, %c0_23, %c0_24] : memref<2x8x32xf32, #tpu.memory_space<vmem>>, vector<1x8x32xf32>
    %17 = vector.shape_cast %16 : vector<1x8x32xf32> to vector<8x32xf32>
    %18 = arith.truncf %11 : vector<8x32xf32> to vector<8x32xbf16>
    %cst = arith.constant dense<0.000000e+00> : vector<8x128xf32>
    %19 = tpu.matmul %18, %1, %cst {dimension_numbers = #tpu.dot_dimension_numbers<[1], [0], [0], [1], [0, 0, 1, 1], [], []>} : vector<8x32xbf16>, vector<32x128xbf16>, vector<8x128xf32> -> vector<8x128xf32>
    %20 = arith.addf %19, %7 : vector<8x128xf32>
    %21 = arith.negf %20 : vector<8x128xf32>
    %22 = math.exp %21 : vector<8x128xf32>
    %cst_25 = arith.constant 1.000000e+00 : f32
    %23 = vector.broadcast %cst_25 : f32 to vector<8x128xf32>
    %24 = arith.addf %23, %22 : vector<8x128xf32>
    %25 = arith.divf %23, %24 : vector<8x128xf32>
    %26 = vector.extract_strided_slice %25 {offsets = [0, 0], sizes = [8, 32], strides = [1, 1]} : vector<8x128xf32> to vector<8x32xf32>
    %27 = vector.extract_strided_slice %25 {offsets = [0, 32], sizes = [8, 32], strides = [1, 1]} : vector<8x128xf32> to vector<8x32xf32>
    %28 = vector.extract_strided_slice %25 {offsets = [0, 64], sizes = [8, 32], strides = [1, 1]} : vector<8x128xf32> to vector<8x32xf32>
    %cst_26 = arith.constant 2.000000e+00 : f32
    %29 = vector.broadcast %cst_26 : f32 to vector<8x32xf32>
    %30 = arith.mulf %29, %28 : vector<8x32xf32>
    %cst_27 = arith.constant 1.000000e+00 : f32
    %31 = vector.broadcast %cst_27 : f32 to vector<8x32xf32>
    %32 = arith.subf %30, %31 : vector<8x32xf32>
    %33 = vector.extract_strided_slice %25 {offsets = [0, 96], sizes = [8, 32], strides = [1, 1]} : vector<8x128xf32> to vector<8x32xf32>
    %34 = arith.mulf %27, %15 : vector<8x32xf32>
    %35 = arith.mulf %26, %32 : vector<8x32xf32>
    %36 = arith.addf %34, %35 : vector<8x32xf32>
    %37 = math.tanh %36 : vector<8x32xf32>
    %38 = arith.mulf %33, %37 : vector<8x32xf32>
    %39 = arith.truncf %38 : vector<8x32xf32> to vector<8x32xbf16>
    %cst_28 = arith.constant dense<0.000000e+00> : vector<8x128xf32>
    %40 = tpu.matmul %39, %1, %cst_28 {dimension_numbers = #tpu.dot_dimension_numbers<[1], [0], [0], [1], [0, 0, 1, 1], [], []>} : vector<8x32xbf16>, vector<32x128xbf16>, vector<8x128xf32> -> vector<8x128xf32>
    %41 = arith.addf %40, %7 : vector<8x128xf32>
    %42 = arith.truncf %13 : vector<8x32xf32> to vector<8x32xbf16>
    %cst_29 = arith.constant dense<0.000000e+00> : vector<8x128xf32>
    %43 = tpu.matmul %42, %3, %cst_29 {dimension_numbers = #tpu.dot_dimension_numbers<[1], [0], [0], [1], [0, 0, 1, 1], [], []>} : vector<8x32xbf16>, vector<32x128xbf16>, vector<8x128xf32> -> vector<8x128xf32>
    %44 = arith.addf %43, %9 : vector<8x128xf32>
    %45 = arith.truncf %38 : vector<8x32xf32> to vector<8x32xbf16>
    %cst_30 = arith.constant dense<0.000000e+00> : vector<8x128xf32>
    %46 = tpu.matmul %45, %5, %cst_30 {dimension_numbers = #tpu.dot_dimension_numbers<[1], [0], [0], [1], [0, 0, 1, 1], [], []>} : vector<8x32xbf16>, vector<32x128xbf16>, vector<8x128xf32> -> vector<8x128xf32>
    %47 = arith.addf %44, %46 : vector<8x128xf32>
    %48 = arith.negf %41 : vector<8x128xf32>
    %49 = math.exp %48 : vector<8x128xf32>
    %cst_31 = arith.constant 1.000000e+00 : f32
    %50 = vector.broadcast %cst_31 : f32 to vector<8x128xf32>
    %51 = arith.addf %50, %49 : vector<8x128xf32>
    %52 = arith.divf %50, %51 : vector<8x128xf32>
    %53 = vector.extract_strided_slice %52 {offsets = [0, 0], sizes = [8, 32], strides = [1, 1]} : vector<8x128xf32> to vector<8x32xf32>
    %54 = vector.extract_strided_slice %52 {offsets = [0, 32], sizes = [8, 32], strides = [1, 1]} : vector<8x128xf32> to vector<8x32xf32>
    %55 = vector.extract_strided_slice %52 {offsets = [0, 64], sizes = [8, 32], strides = [1, 1]} : vector<8x128xf32> to vector<8x32xf32>
    %cst_32 = arith.constant 2.000000e+00 : f32
    %56 = vector.broadcast %cst_32 : f32 to vector<8x32xf32>
    %57 = arith.mulf %56, %55 : vector<8x32xf32>
    %cst_33 = arith.constant 1.000000e+00 : f32
    %58 = vector.broadcast %cst_33 : f32 to vector<8x32xf32>
    %59 = arith.subf %57, %58 : vector<8x32xf32>
    %60 = vector.extract_strided_slice %52 {offsets = [0, 96], sizes = [8, 32], strides = [1, 1]} : vector<8x128xf32> to vector<8x32xf32>
    %61 = arith.mulf %54, %36 : vector<8x32xf32>
    %62 = arith.mulf %53, %59 : vector<8x32xf32>
    %63 = arith.addf %61, %62 : vector<8x32xf32>
    %64 = math.tanh %63 : vector<8x32xf32>
    %65 = arith.mulf %60, %64 : vector<8x32xf32>
    %66 = arith.negf %47 : vector<8x128xf32>
    %67 = math.exp %66 : vector<8x128xf32>
    %cst_34 = arith.constant 1.000000e+00 : f32
    %68 = vector.broadcast %cst_34 : f32 to vector<8x128xf32>
    %69 = arith.addf %68, %67 : vector<8x128xf32>
    %70 = arith.divf %68, %69 : vector<8x128xf32>
    %71 = vector.extract_strided_slice %70 {offsets = [0, 0], sizes = [8, 32], strides = [1, 1]} : vector<8x128xf32> to vector<8x32xf32>
    %72 = vector.extract_strided_slice %70 {offsets = [0, 32], sizes = [8, 32], strides = [1, 1]} : vector<8x128xf32> to vector<8x32xf32>
    %73 = vector.extract_strided_slice %70 {offsets = [0, 64], sizes = [8, 32], strides = [1, 1]} : vector<8x128xf32> to vector<8x32xf32>
    %cst_35 = arith.constant 2.000000e+00 : f32
    %74 = vector.broadcast %cst_35 : f32 to vector<8x32xf32>
    %75 = arith.mulf %74, %73 : vector<8x32xf32>
    %cst_36 = arith.constant 1.000000e+00 : f32
    %76 = vector.broadcast %cst_36 : f32 to vector<8x32xf32>
    %77 = arith.subf %75, %76 : vector<8x32xf32>
    %78 = vector.extract_strided_slice %70 {offsets = [0, 96], sizes = [8, 32], strides = [1, 1]} : vector<8x128xf32> to vector<8x32xf32>
    %79 = arith.mulf %72, %17 : vector<8x32xf32>
    %80 = arith.mulf %71, %77 : vector<8x32xf32>
    %81 = arith.addf %79, %80 : vector<8x32xf32>
    %82 = math.tanh %81 : vector<8x32xf32>
    %83 = arith.mulf %78, %82 : vector<8x32xf32>
    %84 = arith.truncf %65 : vector<8x32xf32> to vector<8x32xbf16>
    %cst_37 = arith.constant dense<0.000000e+00> : vector<8x128xf32>
    %85 = tpu.matmul %84, %1, %cst_37 {dimension_numbers = #tpu.dot_dimension_numbers<[1], [0], [0], [1], [0, 0, 1, 1], [], []>} : vector<8x32xbf16>, vector<32x128xbf16>, vector<8x128xf32> -> vector<8x128xf32>
    %86 = arith.addf %85, %7 : vector<8x128xf32>
    %87 = arith.truncf %83 : vector<8x32xf32> to vector<8x32xbf16>
    %cst_38 = arith.constant dense<0.000000e+00> : vector<8x128xf32>
    %88 = tpu.matmul %87, %3, %cst_38 {dimension_numbers = #tpu.dot_dimension_numbers<[1], [0], [0], [1], [0, 0, 1, 1], [], []>} : vector<8x32xbf16>, vector<32x128xbf16>, vector<8x128xf32> -> vector<8x128xf32>
    %89 = arith.addf %88, %9 : vector<8x128xf32>
    %90 = arith.truncf %65 : vector<8x32xf32> to vector<8x32xbf16>
    %cst_39 = arith.constant dense<0.000000e+00> : vector<8x128xf32>
    %91 = tpu.matmul %90, %5, %cst_39 {dimension_numbers = #tpu.dot_dimension_numbers<[1], [0], [0], [1], [0, 0, 1, 1], [], []>} : vector<8x32xbf16>, vector<32x128xbf16>, vector<8x128xf32> -> vector<8x128xf32>
    %92 = arith.addf %89, %91 : vector<8x128xf32>
    %93 = arith.negf %86 : vector<8x128xf32>
    %94 = math.exp %93 : vector<8x128xf32>
    %cst_40 = arith.constant 1.000000e+00 : f32
    %95 = vector.broadcast %cst_40 : f32 to vector<8x128xf32>
    %96 = arith.addf %95, %94 : vector<8x128xf32>
    %97 = arith.divf %95, %96 : vector<8x128xf32>
    %98 = vector.extract_strided_slice %97 {offsets = [0, 0], sizes = [8, 32], strides = [1, 1]} : vector<8x128xf32> to vector<8x32xf32>
    %99 = vector.extract_strided_slice %97 {offsets = [0, 32], sizes = [8, 32], strides = [1, 1]} : vector<8x128xf32> to vector<8x32xf32>
    %100 = vector.extract_strided_slice %97 {offsets = [0, 64], sizes = [8, 32], strides = [1, 1]} : vector<8x128xf32> to vector<8x32xf32>
    %cst_41 = arith.constant 2.000000e+00 : f32
    %101 = vector.broadcast %cst_41 : f32 to vector<8x32xf32>
    %102 = arith.mulf %101, %100 : vector<8x32xf32>
    %cst_42 = arith.constant 1.000000e+00 : f32
    %103 = vector.broadcast %cst_42 : f32 to vector<8x32xf32>
    %104 = arith.subf %102, %103 : vector<8x32xf32>
    %105 = vector.extract_strided_slice %97 {offsets = [0, 96], sizes = [8, 32], strides = [1, 1]} : vector<8x128xf32> to vector<8x32xf32>
    %106 = arith.mulf %99, %63 : vector<8x32xf32>
    %107 = arith.mulf %98, %104 : vector<8x32xf32>
    %108 = arith.addf %106, %107 : vector<8x32xf32>
    %109 = math.tanh %108 : vector<8x32xf32>
    %110 = arith.mulf %105, %109 : vector<8x32xf32>
    %111 = arith.negf %92 : vector<8x128xf32>
    %112 = math.exp %111 : vector<8x128xf32>
    %cst_43 = arith.constant 1.000000e+00 : f32
    %113 = vector.broadcast %cst_43 : f32 to vector<8x128xf32>
    %114 = arith.addf %113, %112 : vector<8x128xf32>
    %115 = arith.divf %113, %114 : vector<8x128xf32>
    %116 = vector.extract_strided_slice %115 {offsets = [0, 0], sizes = [8, 32], strides = [1, 1]} : vector<8x128xf32> to vector<8x32xf32>
    %117 = vector.extract_strided_slice %115 {offsets = [0, 32], sizes = [8, 32], strides = [1, 1]} : vector<8x128xf32> to vector<8x32xf32>
    %118 = vector.extract_strided_slice %115 {offsets = [0, 64], sizes = [8, 32], strides = [1, 1]} : vector<8x128xf32> to vector<8x32xf32>
    %cst_44 = arith.constant 2.000000e+00 : f32
    %119 = vector.broadcast %cst_44 : f32 to vector<8x32xf32>
    %120 = arith.mulf %119, %118 : vector<8x32xf32>
    %cst_45 = arith.constant 1.000000e+00 : f32
    %121 = vector.broadcast %cst_45 : f32 to vector<8x32xf32>
    %122 = arith.subf %120, %121 : vector<8x32xf32>
    %123 = vector.extract_strided_slice %115 {offsets = [0, 96], sizes = [8, 32], strides = [1, 1]} : vector<8x128xf32> to vector<8x32xf32>
    %124 = arith.mulf %117, %81 : vector<8x32xf32>
    %125 = arith.mulf %116, %122 : vector<8x32xf32>
    %126 = arith.addf %124, %125 : vector<8x32xf32>
    %127 = math.tanh %126 : vector<8x32xf32>
    %128 = arith.mulf %123, %127 : vector<8x32xf32>
    %129 = arith.truncf %110 : vector<8x32xf32> to vector<8x32xbf16>
    %cst_46 = arith.constant dense<0.000000e+00> : vector<8x128xf32>
    %130 = tpu.matmul %129, %1, %cst_46 {dimension_numbers = #tpu.dot_dimension_numbers<[1], [0], [0], [1], [0, 0, 1, 1], [], []>} : vector<8x32xbf16>, vector<32x128xbf16>, vector<8x128xf32> -> vector<8x128xf32>
    %131 = arith.addf %130, %7 : vector<8x128xf32>
    %132 = arith.truncf %128 : vector<8x32xf32> to vector<8x32xbf16>
    %cst_47 = arith.constant dense<0.000000e+00> : vector<8x128xf32>
    %133 = tpu.matmul %132, %3, %cst_47 {dimension_numbers = #tpu.dot_dimension_numbers<[1], [0], [0], [1], [0, 0, 1, 1], [], []>} : vector<8x32xbf16>, vector<32x128xbf16>, vector<8x128xf32> -> vector<8x128xf32>
    %134 = arith.addf %133, %9 : vector<8x128xf32>
    %135 = arith.truncf %110 : vector<8x32xf32> to vector<8x32xbf16>
    %cst_48 = arith.constant dense<0.000000e+00> : vector<8x128xf32>
    %136 = tpu.matmul %135, %5, %cst_48 {dimension_numbers = #tpu.dot_dimension_numbers<[1], [0], [0], [1], [0, 0, 1, 1], [], []>} : vector<8x32xbf16>, vector<32x128xbf16>, vector<8x128xf32> -> vector<8x128xf32>
    %137 = arith.addf %134, %136 : vector<8x128xf32>
    %138 = arith.negf %131 : vector<8x128xf32>
    %139 = math.exp %138 : vector<8x128xf32>
    %cst_49 = arith.constant 1.000000e+00 : f32
    %140 = vector.broadcast %cst_49 : f32 to vector<8x128xf32>
    %141 = arith.addf %140, %139 : vector<8x128xf32>
    %142 = arith.divf %140, %141 : vector<8x128xf32>
    %143 = vector.extract_strided_slice %142 {offsets = [0, 0], sizes = [8, 32], strides = [1, 1]} : vector<8x128xf32> to vector<8x32xf32>
    %144 = vector.extract_strided_slice %142 {offsets = [0, 32], sizes = [8, 32], strides = [1, 1]} : vector<8x128xf32> to vector<8x32xf32>
    %145 = vector.extract_strided_slice %142 {offsets = [0, 64], sizes = [8, 32], strides = [1, 1]} : vector<8x128xf32> to vector<8x32xf32>
    %cst_50 = arith.constant 2.000000e+00 : f32
    %146 = vector.broadcast %cst_50 : f32 to vector<8x32xf32>
    %147 = arith.mulf %146, %145 : vector<8x32xf32>
    %cst_51 = arith.constant 1.000000e+00 : f32
    %148 = vector.broadcast %cst_51 : f32 to vector<8x32xf32>
    %149 = arith.subf %147, %148 : vector<8x32xf32>
    %150 = vector.extract_strided_slice %142 {offsets = [0, 96], sizes = [8, 32], strides = [1, 1]} : vector<8x128xf32> to vector<8x32xf32>
    %151 = arith.mulf %144, %108 : vector<8x32xf32>
    %152 = arith.mulf %143, %149 : vector<8x32xf32>
    %153 = arith.addf %151, %152 : vector<8x32xf32>
    %154 = math.tanh %153 : vector<8x32xf32>
    %155 = arith.mulf %150, %154 : vector<8x32xf32>
    %156 = arith.negf %137 : vector<8x128xf32>
    %157 = math.exp %156 : vector<8x128xf32>
    %cst_52 = arith.constant 1.000000e+00 : f32
    %158 = vector.broadcast %cst_52 : f32 to vector<8x128xf32>
    %159 = arith.addf %158, %157 : vector<8x128xf32>
    %160 = arith.divf %158, %159 : vector<8x128xf32>
    %161 = vector.extract_strided_slice %160 {offsets = [0, 0], sizes = [8, 32], strides = [1, 1]} : vector<8x128xf32> to vector<8x32xf32>
    %162 = vector.extract_strided_slice %160 {offsets = [0, 32], sizes = [8, 32], strides = [1, 1]} : vector<8x128xf32> to vector<8x32xf32>
    %163 = vector.extract_strided_slice %160 {offsets = [0, 64], sizes = [8, 32], strides = [1, 1]} : vector<8x128xf32> to vector<8x32xf32>
    %cst_53 = arith.constant 2.000000e+00 : f32
    %164 = vector.broadcast %cst_53 : f32 to vector<8x32xf32>
    %165 = arith.mulf %164, %163 : vector<8x32xf32>
    %cst_54 = arith.constant 1.000000e+00 : f32
    %166 = vector.broadcast %cst_54 : f32 to vector<8x32xf32>
    %167 = arith.subf %165, %166 : vector<8x32xf32>
    %168 = vector.extract_strided_slice %160 {offsets = [0, 96], sizes = [8, 32], strides = [1, 1]} : vector<8x128xf32> to vector<8x32xf32>
    %169 = arith.mulf %162, %126 : vector<8x32xf32>
    %170 = arith.mulf %161, %167 : vector<8x32xf32>
    %171 = arith.addf %169, %170 : vector<8x32xf32>
    %172 = math.tanh %171 : vector<8x32xf32>
    %173 = arith.mulf %168, %172 : vector<8x32xf32>
    %174 = arith.truncf %155 : vector<8x32xf32> to vector<8x32xbf16>
    %cst_55 = arith.constant dense<0.000000e+00> : vector<8x128xf32>
    %175 = tpu.matmul %174, %1, %cst_55 {dimension_numbers = #tpu.dot_dimension_numbers<[1], [0], [0], [1], [0, 0, 1, 1], [], []>} : vector<8x32xbf16>, vector<32x128xbf16>, vector<8x128xf32> -> vector<8x128xf32>
    %176 = arith.addf %175, %7 : vector<8x128xf32>
    %177 = arith.truncf %173 : vector<8x32xf32> to vector<8x32xbf16>
    %cst_56 = arith.constant dense<0.000000e+00> : vector<8x128xf32>
    %178 = tpu.matmul %177, %3, %cst_56 {dimension_numbers = #tpu.dot_dimension_numbers<[1], [0], [0], [1], [0, 0, 1, 1], [], []>} : vector<8x32xbf16>, vector<32x128xbf16>, vector<8x128xf32> -> vector<8x128xf32>
    %179 = arith.addf %178, %9 : vector<8x128xf32>
    %180 = arith.truncf %155 : vector<8x32xf32> to vector<8x32xbf16>
    %cst_57 = arith.constant dense<0.000000e+00> : vector<8x128xf32>
    %181 = tpu.matmul %180, %5, %cst_57 {dimension_numbers = #tpu.dot_dimension_numbers<[1], [0], [0], [1], [0, 0, 1, 1], [], []>} : vector<8x32xbf16>, vector<32x128xbf16>, vector<8x128xf32> -> vector<8x128xf32>
    %182 = arith.addf %179, %181 : vector<8x128xf32>
    %183 = arith.negf %176 : vector<8x128xf32>
    %184 = math.exp %183 : vector<8x128xf32>
    %cst_58 = arith.constant 1.000000e+00 : f32
    %185 = vector.broadcast %cst_58 : f32 to vector<8x128xf32>
    %186 = arith.addf %185, %184 : vector<8x128xf32>
    %187 = arith.divf %185, %186 : vector<8x128xf32>
    %188 = vector.extract_strided_slice %187 {offsets = [0, 0], sizes = [8, 32], strides = [1, 1]} : vector<8x128xf32> to vector<8x32xf32>
    %189 = vector.extract_strided_slice %187 {offsets = [0, 32], sizes = [8, 32], strides = [1, 1]} : vector<8x128xf32> to vector<8x32xf32>
    %190 = vector.extract_strided_slice %187 {offsets = [0, 64], sizes = [8, 32], strides = [1, 1]} : vector<8x128xf32> to vector<8x32xf32>
    %cst_59 = arith.constant 2.000000e+00 : f32
    %191 = vector.broadcast %cst_59 : f32 to vector<8x32xf32>
    %192 = arith.mulf %191, %190 : vector<8x32xf32>
    %cst_60 = arith.constant 1.000000e+00 : f32
    %193 = vector.broadcast %cst_60 : f32 to vector<8x32xf32>
    %194 = arith.subf %192, %193 : vector<8x32xf32>
    %195 = vector.extract_strided_slice %187 {offsets = [0, 96], sizes = [8, 32], strides = [1, 1]} : vector<8x128xf32> to vector<8x32xf32>
    %196 = arith.mulf %189, %153 : vector<8x32xf32>
    %197 = arith.mulf %188, %194 : vector<8x32xf32>
    %198 = arith.addf %196, %197 : vector<8x32xf32>
    %199 = math.tanh %198 : vector<8x32xf32>
    %200 = arith.mulf %195, %199 : vector<8x32xf32>
    %201 = arith.negf %182 : vector<8x128xf32>
    %202 = math.exp %201 : vector<8x128xf32>
    %cst_61 = arith.constant 1.000000e+00 : f32
    %203 = vector.broadcast %cst_61 : f32 to vector<8x128xf32>
    %204 = arith.addf %203, %202 : vector<8x128xf32>
    %205 = arith.divf %203, %204 : vector<8x128xf32>
    %206 = vector.extract_strided_slice %205 {offsets = [0, 0], sizes = [8, 32], strides = [1, 1]} : vector<8x128xf32> to vector<8x32xf32>
    %207 = vector.extract_strided_slice %205 {offsets = [0, 32], sizes = [8, 32], strides = [1, 1]} : vector<8x128xf32> to vector<8x32xf32>
    %208 = vector.extract_strided_slice %205 {offsets = [0, 64], sizes = [8, 32], strides = [1, 1]} : vector<8x128xf32> to vector<8x32xf32>
    %cst_62 = arith.constant 2.000000e+00 : f32
    %209 = vector.broadcast %cst_62 : f32 to vector<8x32xf32>
    %210 = arith.mulf %209, %208 : vector<8x32xf32>
    %cst_63 = arith.constant 1.000000e+00 : f32
    %211 = vector.broadcast %cst_63 : f32 to vector<8x32xf32>
    %212 = arith.subf %210, %211 : vector<8x32xf32>
    %213 = vector.extract_strided_slice %205 {offsets = [0, 96], sizes = [8, 32], strides = [1, 1]} : vector<8x128xf32> to vector<8x32xf32>
    %214 = arith.mulf %207, %171 : vector<8x32xf32>
    %215 = arith.mulf %206, %212 : vector<8x32xf32>
    %216 = arith.addf %214, %215 : vector<8x32xf32>
    %217 = math.tanh %216 : vector<8x32xf32>
    %218 = arith.mulf %213, %217 : vector<8x32xf32>
    %219 = arith.truncf %200 : vector<8x32xf32> to vector<8x32xbf16>
    %cst_64 = arith.constant dense<0.000000e+00> : vector<8x128xf32>
    %220 = tpu.matmul %219, %1, %cst_64 {dimension_numbers = #tpu.dot_dimension_numbers<[1], [0], [0], [1], [0, 0, 1, 1], [], []>} : vector<8x32xbf16>, vector<32x128xbf16>, vector<8x128xf32> -> vector<8x128xf32>
    %221 = arith.addf %220, %7 : vector<8x128xf32>
    %222 = arith.truncf %218 : vector<8x32xf32> to vector<8x32xbf16>
    %cst_65 = arith.constant dense<0.000000e+00> : vector<8x128xf32>
    %223 = tpu.matmul %222, %3, %cst_65 {dimension_numbers = #tpu.dot_dimension_numbers<[1], [0], [0], [1], [0, 0, 1, 1], [], []>} : vector<8x32xbf16>, vector<32x128xbf16>, vector<8x128xf32> -> vector<8x128xf32>
    %224 = arith.addf %223, %9 : vector<8x128xf32>
    %225 = arith.truncf %200 : vector<8x32xf32> to vector<8x32xbf16>
    %cst_66 = arith.constant dense<0.000000e+00> : vector<8x128xf32>
    %226 = tpu.matmul %225, %5, %cst_66 {dimension_numbers = #tpu.dot_dimension_numbers<[1], [0], [0], [1], [0, 0, 1, 1], [], []>} : vector<8x32xbf16>, vector<32x128xbf16>, vector<8x128xf32> -> vector<8x128xf32>
    %227 = arith.addf %224, %226 : vector<8x128xf32>
    %228 = arith.negf %221 : vector<8x128xf32>
    %229 = math.exp %228 : vector<8x128xf32>
    %cst_67 = arith.constant 1.000000e+00 : f32
    %230 = vector.broadcast %cst_67 : f32 to vector<8x128xf32>
    %231 = arith.addf %230, %229 : vector<8x128xf32>
    %232 = arith.divf %230, %231 : vector<8x128xf32>
    %233 = vector.extract_strided_slice %232 {offsets = [0, 0], sizes = [8, 32], strides = [1, 1]} : vector<8x128xf32> to vector<8x32xf32>
    %234 = vector.extract_strided_slice %232 {offsets = [0, 32], sizes = [8, 32], strides = [1, 1]} : vector<8x128xf32> to vector<8x32xf32>
    %235 = vector.extract_strided_slice %232 {offsets = [0, 64], sizes = [8, 32], strides = [1, 1]} : vector<8x128xf32> to vector<8x32xf32>
    %cst_68 = arith.constant 2.000000e+00 : f32
    %236 = vector.broadcast %cst_68 : f32 to vector<8x32xf32>
    %237 = arith.mulf %236, %235 : vector<8x32xf32>
    %cst_69 = arith.constant 1.000000e+00 : f32
    %238 = vector.broadcast %cst_69 : f32 to vector<8x32xf32>
    %239 = arith.subf %237, %238 : vector<8x32xf32>
    %240 = vector.extract_strided_slice %232 {offsets = [0, 96], sizes = [8, 32], strides = [1, 1]} : vector<8x128xf32> to vector<8x32xf32>
    %241 = arith.mulf %234, %198 : vector<8x32xf32>
    %242 = arith.mulf %233, %239 : vector<8x32xf32>
    %243 = arith.addf %241, %242 : vector<8x32xf32>
    %244 = math.tanh %243 : vector<8x32xf32>
    %245 = arith.mulf %240, %244 : vector<8x32xf32>
    %246 = arith.negf %227 : vector<8x128xf32>
    %247 = math.exp %246 : vector<8x128xf32>
    %cst_70 = arith.constant 1.000000e+00 : f32
    %248 = vector.broadcast %cst_70 : f32 to vector<8x128xf32>
    %249 = arith.addf %248, %247 : vector<8x128xf32>
    %250 = arith.divf %248, %249 : vector<8x128xf32>
    %251 = vector.extract_strided_slice %250 {offsets = [0, 0], sizes = [8, 32], strides = [1, 1]} : vector<8x128xf32> to vector<8x32xf32>
    %252 = vector.extract_strided_slice %250 {offsets = [0, 32], sizes = [8, 32], strides = [1, 1]} : vector<8x128xf32> to vector<8x32xf32>
    %253 = vector.extract_strided_slice %250 {offsets = [0, 64], sizes = [8, 32], strides = [1, 1]} : vector<8x128xf32> to vector<8x32xf32>
    %cst_71 = arith.constant 2.000000e+00 : f32
    %254 = vector.broadcast %cst_71 : f32 to vector<8x32xf32>
    %255 = arith.mulf %254, %253 : vector<8x32xf32>
    %cst_72 = arith.constant 1.000000e+00 : f32
    %256 = vector.broadcast %cst_72 : f32 to vector<8x32xf32>
    %257 = arith.subf %255, %256 : vector<8x32xf32>
    %258 = vector.extract_strided_slice %250 {offsets = [0, 96], sizes = [8, 32], strides = [1, 1]} : vector<8x128xf32> to vector<8x32xf32>
    %259 = arith.mulf %252, %216 : vector<8x32xf32>
    %260 = arith.mulf %251, %257 : vector<8x32xf32>
    %261 = arith.addf %259, %260 : vector<8x32xf32>
    %262 = math.tanh %261 : vector<8x32xf32>
    %263 = arith.mulf %258, %262 : vector<8x32xf32>
    %264 = arith.truncf %245 : vector<8x32xf32> to vector<8x32xbf16>
    %cst_73 = arith.constant dense<0.000000e+00> : vector<8x128xf32>
    %265 = tpu.matmul %264, %1, %cst_73 {dimension_numbers = #tpu.dot_dimension_numbers<[1], [0], [0], [1], [0, 0, 1, 1], [], []>} : vector<8x32xbf16>, vector<32x128xbf16>, vector<8x128xf32> -> vector<8x128xf32>
    %266 = arith.addf %265, %7 : vector<8x128xf32>
    %267 = arith.truncf %263 : vector<8x32xf32> to vector<8x32xbf16>
    %cst_74 = arith.constant dense<0.000000e+00> : vector<8x128xf32>
    %268 = tpu.matmul %267, %3, %cst_74 {dimension_numbers = #tpu.dot_dimension_numbers<[1], [0], [0], [1], [0, 0, 1, 1], [], []>} : vector<8x32xbf16>, vector<32x128xbf16>, vector<8x128xf32> -> vector<8x128xf32>
    %269 = arith.addf %268, %9 : vector<8x128xf32>
    %270 = arith.truncf %245 : vector<8x32xf32> to vector<8x32xbf16>
    %cst_75 = arith.constant dense<0.000000e+00> : vector<8x128xf32>
    %271 = tpu.matmul %270, %5, %cst_75 {dimension_numbers = #tpu.dot_dimension_numbers<[1], [0], [0], [1], [0, 0, 1, 1], [], []>} : vector<8x32xbf16>, vector<32x128xbf16>, vector<8x128xf32> -> vector<8x128xf32>
    %272 = arith.addf %269, %271 : vector<8x128xf32>
    %273 = arith.negf %266 : vector<8x128xf32>
    %274 = math.exp %273 : vector<8x128xf32>
    %cst_76 = arith.constant 1.000000e+00 : f32
    %275 = vector.broadcast %cst_76 : f32 to vector<8x128xf32>
    %276 = arith.addf %275, %274 : vector<8x128xf32>
    %277 = arith.divf %275, %276 : vector<8x128xf32>
    %278 = vector.extract_strided_slice %277 {offsets = [0, 0], sizes = [8, 32], strides = [1, 1]} : vector<8x128xf32> to vector<8x32xf32>
    %279 = vector.extract_strided_slice %277 {offsets = [0, 32], sizes = [8, 32], strides = [1, 1]} : vector<8x128xf32> to vector<8x32xf32>
    %280 = vector.extract_strided_slice %277 {offsets = [0, 64], sizes = [8, 32], strides = [1, 1]} : vector<8x128xf32> to vector<8x32xf32>
    %cst_77 = arith.constant 2.000000e+00 : f32
    %281 = vector.broadcast %cst_77 : f32 to vector<8x32xf32>
    %282 = arith.mulf %281, %280 : vector<8x32xf32>
    %cst_78 = arith.constant 1.000000e+00 : f32
    %283 = vector.broadcast %cst_78 : f32 to vector<8x32xf32>
    %284 = arith.subf %282, %283 : vector<8x32xf32>
    %285 = vector.extract_strided_slice %277 {offsets = [0, 96], sizes = [8, 32], strides = [1, 1]} : vector<8x128xf32> to vector<8x32xf32>
    %286 = arith.mulf %279, %243 : vector<8x32xf32>
    %287 = arith.mulf %278, %284 : vector<8x32xf32>
    %288 = arith.addf %286, %287 : vector<8x32xf32>
    %289 = math.tanh %288 : vector<8x32xf32>
    %290 = arith.mulf %285, %289 : vector<8x32xf32>
    %291 = arith.negf %272 : vector<8x128xf32>
    %292 = math.exp %291 : vector<8x128xf32>
    %cst_79 = arith.constant 1.000000e+00 : f32
    %293 = vector.broadcast %cst_79 : f32 to vector<8x128xf32>
    %294 = arith.addf %293, %292 : vector<8x128xf32>
    %295 = arith.divf %293, %294 : vector<8x128xf32>
    %296 = vector.extract_strided_slice %295 {offsets = [0, 0], sizes = [8, 32], strides = [1, 1]} : vector<8x128xf32> to vector<8x32xf32>
    %297 = vector.extract_strided_slice %295 {offsets = [0, 32], sizes = [8, 32], strides = [1, 1]} : vector<8x128xf32> to vector<8x32xf32>
    %298 = vector.extract_strided_slice %295 {offsets = [0, 64], sizes = [8, 32], strides = [1, 1]} : vector<8x128xf32> to vector<8x32xf32>
    %cst_80 = arith.constant 2.000000e+00 : f32
    %299 = vector.broadcast %cst_80 : f32 to vector<8x32xf32>
    %300 = arith.mulf %299, %298 : vector<8x32xf32>
    %cst_81 = arith.constant 1.000000e+00 : f32
    %301 = vector.broadcast %cst_81 : f32 to vector<8x32xf32>
    %302 = arith.subf %300, %301 : vector<8x32xf32>
    %303 = vector.extract_strided_slice %295 {offsets = [0, 96], sizes = [8, 32], strides = [1, 1]} : vector<8x128xf32> to vector<8x32xf32>
    %304 = arith.mulf %297, %261 : vector<8x32xf32>
    %305 = arith.mulf %296, %302 : vector<8x32xf32>
    %306 = arith.addf %304, %305 : vector<8x32xf32>
    %307 = math.tanh %306 : vector<8x32xf32>
    %308 = arith.mulf %303, %307 : vector<8x32xf32>
    %309 = arith.truncf %290 : vector<8x32xf32> to vector<8x32xbf16>
    %cst_82 = arith.constant dense<0.000000e+00> : vector<8x128xf32>
    %310 = tpu.matmul %309, %1, %cst_82 {dimension_numbers = #tpu.dot_dimension_numbers<[1], [0], [0], [1], [0, 0, 1, 1], [], []>} : vector<8x32xbf16>, vector<32x128xbf16>, vector<8x128xf32> -> vector<8x128xf32>
    %311 = arith.addf %310, %7 : vector<8x128xf32>
    %312 = arith.truncf %308 : vector<8x32xf32> to vector<8x32xbf16>
    %cst_83 = arith.constant dense<0.000000e+00> : vector<8x128xf32>
    %313 = tpu.matmul %312, %3, %cst_83 {dimension_numbers = #tpu.dot_dimension_numbers<[1], [0], [0], [1], [0, 0, 1, 1], [], []>} : vector<8x32xbf16>, vector<32x128xbf16>, vector<8x128xf32> -> vector<8x128xf32>
    %314 = arith.addf %313, %9 : vector<8x128xf32>
    %315 = arith.truncf %290 : vector<8x32xf32> to vector<8x32xbf16>
    %cst_84 = arith.constant dense<0.000000e+00> : vector<8x128xf32>
    %316 = tpu.matmul %315, %5, %cst_84 {dimension_numbers = #tpu.dot_dimension_numbers<[1], [0], [0], [1], [0, 0, 1, 1], [], []>} : vector<8x32xbf16>, vector<32x128xbf16>, vector<8x128xf32> -> vector<8x128xf32>
    %317 = arith.addf %314, %316 : vector<8x128xf32>
    %318 = arith.negf %311 : vector<8x128xf32>
    %319 = math.exp %318 : vector<8x128xf32>
    %cst_85 = arith.constant 1.000000e+00 : f32
    %320 = vector.broadcast %cst_85 : f32 to vector<8x128xf32>
    %321 = arith.addf %320, %319 : vector<8x128xf32>
    %322 = arith.divf %320, %321 : vector<8x128xf32>
    %323 = vector.extract_strided_slice %322 {offsets = [0, 0], sizes = [8, 32], strides = [1, 1]} : vector<8x128xf32> to vector<8x32xf32>
    %324 = vector.extract_strided_slice %322 {offsets = [0, 32], sizes = [8, 32], strides = [1, 1]} : vector<8x128xf32> to vector<8x32xf32>
    %325 = vector.extract_strided_slice %322 {offsets = [0, 64], sizes = [8, 32], strides = [1, 1]} : vector<8x128xf32> to vector<8x32xf32>
    %cst_86 = arith.constant 2.000000e+00 : f32
    %326 = vector.broadcast %cst_86 : f32 to vector<8x32xf32>
    %327 = arith.mulf %326, %325 : vector<8x32xf32>
    %cst_87 = arith.constant 1.000000e+00 : f32
    %328 = vector.broadcast %cst_87 : f32 to vector<8x32xf32>
    %329 = arith.subf %327, %328 : vector<8x32xf32>
    %330 = vector.extract_strided_slice %322 {offsets = [0, 96], sizes = [8, 32], strides = [1, 1]} : vector<8x128xf32> to vector<8x32xf32>
    %331 = arith.mulf %324, %288 : vector<8x32xf32>
    %332 = arith.mulf %323, %329 : vector<8x32xf32>
    %333 = arith.addf %331, %332 : vector<8x32xf32>
    %334 = math.tanh %333 : vector<8x32xf32>
    %335 = arith.mulf %330, %334 : vector<8x32xf32>
    %336 = arith.negf %317 : vector<8x128xf32>
    %337 = math.exp %336 : vector<8x128xf32>
    %cst_88 = arith.constant 1.000000e+00 : f32
    %338 = vector.broadcast %cst_88 : f32 to vector<8x128xf32>
    %339 = arith.addf %338, %337 : vector<8x128xf32>
    %340 = arith.divf %338, %339 : vector<8x128xf32>
    %341 = vector.extract_strided_slice %340 {offsets = [0, 0], sizes = [8, 32], strides = [1, 1]} : vector<8x128xf32> to vector<8x32xf32>
    %342 = vector.extract_strided_slice %340 {offsets = [0, 32], sizes = [8, 32], strides = [1, 1]} : vector<8x128xf32> to vector<8x32xf32>
    %343 = vector.extract_strided_slice %340 {offsets = [0, 64], sizes = [8, 32], strides = [1, 1]} : vector<8x128xf32> to vector<8x32xf32>
    %cst_89 = arith.constant 2.000000e+00 : f32
    %344 = vector.broadcast %cst_89 : f32 to vector<8x32xf32>
    %345 = arith.mulf %344, %343 : vector<8x32xf32>
    %cst_90 = arith.constant 1.000000e+00 : f32
    %346 = vector.broadcast %cst_90 : f32 to vector<8x32xf32>
    %347 = arith.subf %345, %346 : vector<8x32xf32>
    %348 = vector.extract_strided_slice %340 {offsets = [0, 96], sizes = [8, 32], strides = [1, 1]} : vector<8x128xf32> to vector<8x32xf32>
    %349 = arith.mulf %342, %306 : vector<8x32xf32>
    %350 = arith.mulf %341, %347 : vector<8x32xf32>
    %351 = arith.addf %349, %350 : vector<8x32xf32>
    %352 = math.tanh %351 : vector<8x32xf32>
    %353 = arith.mulf %348, %352 : vector<8x32xf32>
    %354 = arith.truncf %353 : vector<8x32xf32> to vector<8x32xbf16>
    %cst_91 = arith.constant dense<0.000000e+00> : vector<8x128xf32>
    %355 = tpu.matmul %354, %3, %cst_91 {dimension_numbers = #tpu.dot_dimension_numbers<[1], [0], [0], [1], [0, 0, 1, 1], [], []>} : vector<8x32xbf16>, vector<32x128xbf16>, vector<8x128xf32> -> vector<8x128xf32>
    %356 = arith.addf %355, %9 : vector<8x128xf32>
    %357 = arith.truncf %335 : vector<8x32xf32> to vector<8x32xbf16>
    %cst_92 = arith.constant dense<0.000000e+00> : vector<8x128xf32>
    %358 = tpu.matmul %357, %5, %cst_92 {dimension_numbers = #tpu.dot_dimension_numbers<[1], [0], [0], [1], [0, 0, 1, 1], [], []>} : vector<8x32xbf16>, vector<32x128xbf16>, vector<8x128xf32> -> vector<8x128xf32>
    %359 = arith.addf %356, %358 : vector<8x128xf32>
    %360 = arith.negf %359 : vector<8x128xf32>
    %361 = math.exp %360 : vector<8x128xf32>
    %cst_93 = arith.constant 1.000000e+00 : f32
    %362 = vector.broadcast %cst_93 : f32 to vector<8x128xf32>
    %363 = arith.addf %362, %361 : vector<8x128xf32>
    %364 = arith.divf %362, %363 : vector<8x128xf32>
    %365 = vector.extract_strided_slice %364 {offsets = [0, 0], sizes = [8, 32], strides = [1, 1]} : vector<8x128xf32> to vector<8x32xf32>
    %366 = vector.extract_strided_slice %364 {offsets = [0, 32], sizes = [8, 32], strides = [1, 1]} : vector<8x128xf32> to vector<8x32xf32>
    %367 = vector.extract_strided_slice %364 {offsets = [0, 64], sizes = [8, 32], strides = [1, 1]} : vector<8x128xf32> to vector<8x32xf32>
    %cst_94 = arith.constant 2.000000e+00 : f32
    %368 = vector.broadcast %cst_94 : f32 to vector<8x32xf32>
    %369 = arith.mulf %368, %367 : vector<8x32xf32>
    %cst_95 = arith.constant 1.000000e+00 : f32
    %370 = vector.broadcast %cst_95 : f32 to vector<8x32xf32>
    %371 = arith.subf %369, %370 : vector<8x32xf32>
    %372 = vector.extract_strided_slice %364 {offsets = [0, 96], sizes = [8, 32], strides = [1, 1]} : vector<8x128xf32> to vector<8x32xf32>
    %373 = arith.mulf %366, %351 : vector<8x32xf32>
    %374 = arith.mulf %365, %371 : vector<8x32xf32>
    %375 = arith.addf %373, %374 : vector<8x32xf32>
    %376 = math.tanh %375 : vector<8x32xf32>
    %377 = arith.mulf %372, %376 : vector<8x32xf32>
    %378 = arith.truncf %377 : vector<8x32xf32> to vector<8x32xbf16>
    %c0_96 = arith.constant 0 : index
    %c0_97 = arith.constant 0 : index
    %379 = vector.load %arg5[%c0_96, %c0_97] : memref<32x8xbf16, #tpu.memory_space<vmem>>, vector<32x8xbf16>
    %cst_98 = arith.constant dense<0.000000e+00> : vector<8x8xf32>
    %380 = tpu.matmul %378, %379, %cst_98 {dimension_numbers = #tpu.dot_dimension_numbers<[1], [0], [0], [1], [0, 0, 1, 1], [], []>} : vector<8x32xbf16>, vector<32x8xbf16>, vector<8x8xf32> -> vector<8x8xf32>
    %c0_99 = arith.constant 0 : index
    %c0_100 = arith.constant 0 : index
    %381 = vector.load %arg6[%c0_99, %c0_100] : memref<8x8xf32, #tpu.memory_space<vmem>>, vector<8x8xf32>
    %382 = arith.addf %380, %381 : vector<8x8xf32>
    %c0_101 = arith.constant 0 : index
    %c0_102 = arith.constant 0 : index
    %383 = vector.load %arg7[%c0_101, %c0_102] : memref<8x8xf32, #tpu.memory_space<vmem>>, vector<8x8xf32>
    tpu.vector_store %arg7[%c0_101, %c0_102], %382 {strides = array<i32>} : memref<8x8xf32, #tpu.memory_space<vmem>>, vector<8x8xf32>,
    return
  }
}

</mosaic_0001>

<llo_original>
// kernel: tpu_custom_call.1
$region0: #{tpu_custom_call.1}
  #allocation0 [shape = 'u32[]', space=smem, size = 0x4, offset = 0x4, fixed_abs, tag = 'smem constant byte address 0x4 - core index']
  #allocation1 [shape = 'u32[72,128]{1,0:T(1,128)}', space=vmem, size = 0x9000, scoped, tag = 'internal scratch']
  %s0 = inlined_call_operand.vmem [shape: f32[2,8,32], index: 0, kind: input, shape index: {}]
  %s1 = inlined_call_operand.hbm [shape: f32[2,8,32], index: 1, kind: input, shape index: {}]
  %s2 = inlined_call_operand.hbm [shape: bf16[2,32,128], index: 2, kind: input, shape index: {}]
  %s3 = inlined_call_operand.hbm [shape: bf16[1,32,128], index: 3, kind: input, shape index: {}]
  %s4 = inlined_call_operand.hbm [shape: f32[2,8,128], index: 4, kind: input, shape index: {}]
  %s5 = inlined_call_operand.vmem [shape: bf16[32,8], index: 5, kind: input, shape index: {}]
  %s6 = inlined_call_operand.hbm [shape: f32[8,8], index: 6, kind: input, shape index: {}]
  %s7 = inlined_call_operand.hbm [shape: f32[8,8], index: 7, kind: output, shape index: {}]
  %s8 = sld [smem:[#allocation0]]
  $region58: #{tpu_custom_call.1} parent=0
    _
  %s10 = ssub.s32 1, %s8
  %s11 = scalar_select 0, %s10, %s8
  $region1: #{tpu_custom_call.1} parent=0
    #allocation2 [shape = 'u8[8192]{0}', space=vmem, size = 0x2000, scoped, tag = 'input window, operand 1, single buffered']
    #allocation3 [shape = 's32[1]{0}', space=sflag, size = 0x4, scoped, tag = 'scoped memory for tpu_custom_call.1']
    #allocation4 [shape = 's32[1]{0}', space=sflag, size = 0x4, scoped, tag = 'scoped memory for tpu_custom_call.1']
    #allocation5 [shape = 'u8[16384]{0}', space=vmem, size = 0x4000, scoped, tag = 'input window, operand 2, single buffered']
    #allocation6 [shape = 's32[1]{0}', space=sflag, size = 0x4, scoped, tag = 'scoped memory for tpu_custom_call.1']
    #allocation7 [shape = 'u8[8192]{0}', space=vmem, size = 0x2000, scoped, tag = 'input window, operand 3, single buffered']
    #allocation8 [shape = 'u8[8192]{0}', space=vmem, size = 0x2000, scoped, tag = 'input window, operand 4, single buffered']
    #allocation9 [shape = 's32[1]{0}', space=sflag, size = 0x4, scoped, tag = 'scoped memory for tpu_custom_call.1']
    #allocation10 [shape = 'u8[4096]{0}', space=vmem, size = 0x1000, scoped, tag = 'input window, operand 6, single buffered']
    #allocation11 [shape = 'u8[4096]{0}', space=vmem, size = 0x1000, scoped, tag = 'output window, operand 0, single buffered']
    %12 = vsyncpa [#allocation3], 0
    %13 = vsyncpa [#allocation6], 0
    %14 = vsyncpa [#allocation9], 0
    %15 = vsyncpa [#allocation4], 0
    // Predicated region
    $region2: #{tpu_custom_call.1} parent=1 // pred_check
      _
    $region3: #{tpu_custom_call.1} parent=1 // pred_check_branch
      %17 = sbr.rel (0) target = $region5
    $region4: #{tpu_custom_call.1} parent=1 // pred_region
      _
    $region5: #{tpu_custom_call.1} parent=1 // pred_fallthru
      _
    // Predicated region
    $region6: #{tpu_custom_call.1} parent=1 // pred_check
      _
    $region7: #{tpu_custom_call.1} parent=1 // pred_check_branch
      %19 = sbr.rel (0) target = $region9
    $region8: #{tpu_custom_call.1} parent=1 // pred_region
      %21 = vsyncadd [#allocation3], 0
      %s22 = sshll.u32 %s1, 4
      %s23 = int_to_ptr.hbm [resolvable:$true] %s22
      %s24 = sshll.u32 [#allocation2], 4
      %s25 = int_to_ptr.vmem [resolvable:$true] %s24
      %30 = dma.hbm_to_vmem [thread:$0]  %s23, 256, %s25, [#allocation3], 128, 128, 8
    $region9: #{tpu_custom_call.1} parent=1 // pred_fallthru
      _
    // Predicated region
    $region10: #{tpu_custom_call.1} parent=1 // pred_check
      _
    $region11: #{tpu_custom_call.1} parent=1 // pred_check_branch
      %32 = sbr.rel (0) target = $region13
    $region12: #{tpu_custom_call.1} parent=1 // pred_region
      %34 = vsyncadd [#allocation6], 0
      %s35 = sshll.u32 %s2, 4
      %s36 = int_to_ptr.hbm [resolvable:$true] %s35
      %s37 = sshll.u32 [#allocation5], 4
      %s38 = int_to_ptr.vmem [resolvable:$true] %s37
      %43 = dma.hbm_to_vmem [thread:$0]  %s36, 512, %s38, [#allocation6], 64, 64, 4
    $region13: #{tpu_custom_call.1} parent=1 // pred_fallthru
      _
    // Predicated region
    $region14: #{tpu_custom_call.1} parent=1 // pred_check
      _
    $region15: #{tpu_custom_call.1} parent=1 // pred_check_branch
      %45 = sbr.rel (0) target = $region17
    $region16: #{tpu_custom_call.1} parent=1 // pred_region
      %47 = vsyncadd [#allocation6], 0
      %s48 = sshll.u32 %s3, 4
      %s49 = int_to_ptr.hbm [resolvable:$true] %s48
      %s50 = sshll.u32 [#allocation7], 4
      %s51 = int_to_ptr.vmem [resolvable:$true] %s50
      %56 = dma.hbm_to_vmem [thread:$0]  %s49, 256, %s51, [#allocation6], 64, 64, 4
    $region17: #{tpu_custom_call.1} parent=1 // pred_fallthru
      _
    // Predicated region
    $region18: #{tpu_custom_call.1} parent=1 // pred_check
      _
    $region19: #{tpu_custom_call.1} parent=1 // pred_check_branch
      %58 = sbr.rel (0) target = $region21
    $region20: #{tpu_custom_call.1} parent=1 // pred_region
      %60 = vsyncadd [#allocation9], 0
      %s61 = sshll.u32 %s4, 4
      %s62 = int_to_ptr.hbm [resolvable:$true] %s61
      %s63 = sshll.u32 [#allocation8], 4
      %s64 = int_to_ptr.vmem [resolvable:$true] %s63
      %69 = dma.hbm_to_vmem [thread:$0]  %s62, 256, %s64, [#allocation9], 128, 128, 8
    $region21: #{tpu_custom_call.1} parent=1 // pred_fallthru
      _
    // Predicated region
    $region22: #{tpu_custom_call.1} parent=1 // pred_check
      _
    $region23: #{tpu_custom_call.1} parent=1 // pred_check_branch
      %71 = sbr.rel (0) target = $region25
    $region24: #{tpu_custom_call.1} parent=1 // pred_region
      _
    $region25: #{tpu_custom_call.1} parent=1 // pred_fallthru
      _
    // Predicated region
    $region26: #{tpu_custom_call.1} parent=1 // pred_check
      _
    $region27: #{tpu_custom_call.1} parent=1 // pred_check_branch
      %73 = sbr.rel (0) target = $region29
    $region28: #{tpu_custom_call.1} parent=1 // pred_region
      %75 = vsyncadd [#allocation9], 0
      %s77 = sshll.u32 %s6, 4
      %s78 = int_to_ptr.hbm [resolvable:$true] %s77
      %s79 = sshll.u32 [#allocation10], 4
      %s80 = int_to_ptr.vmem [resolvable:$true] %s79
      %82 = dma.hbm_to_vmem [thread:$0]  %s78, 128, %s80, [#allocation9]
    $region29: #{tpu_custom_call.1} parent=1 // pred_fallthru
      _
    // Predicated region
    $region30: #{tpu_custom_call.1} parent=1 // pred_check
      _
    $region31: #{tpu_custom_call.1} parent=1 // pred_check_branch
      %84 = sbr.rel (0) target = $region33
    $region32: #{tpu_custom_call.1} parent=1 // pred_region
      %86 = dma.done [#allocation3], 256
    $region33: #{tpu_custom_call.1} parent=1 // pred_fallthru
      _
    // Predicated region
    $region34: #{tpu_custom_call.1} parent=1 // pred_check
      _
    $region35: #{tpu_custom_call.1} parent=1 // pred_check_branch
      %88 = sbr.rel (0) target = $region37
    $region36: #{tpu_custom_call.1} parent=1 // pred_region
      %90 = dma.done [#allocation6], 512
    $region37: #{tpu_custom_call.1} parent=1 // pred_fallthru
      _
    // Predicated region
    $region38: #{tpu_custom_call.1} parent=1 // pred_check
      _
    $region39: #{tpu_custom_call.1} parent=1 // pred_check_branch
      %92 = sbr.rel (0) target = $region41
    $region40: #{tpu_custom_call.1} parent=1 // pred_region
      %94 = dma.done [#allocation6], 256
    $region41: #{tpu_custom_call.1} parent=1 // pred_fallthru
      _
    // Predicated region
    $region42: #{tpu_custom_call.1} parent=1 // pred_check
      _
    $region43: #{tpu_custom_call.1} parent=1 // pred_check_branch
      %96 = sbr.rel (0) target = $region45
    $region44: #{tpu_custom_call.1} parent=1 // pred_region
      %98 = dma.done [#allocation9], 256
    $region45: #{tpu_custom_call.1} parent=1 // pred_fallthru
      _
    // Predicated region
    $region46: #{tpu_custom_call.1} parent=1 // pred_check
      _
    $region47: #{tpu_custom_call.1} parent=1 // pred_check_branch
      %100 = sbr.rel (0) target = $region49
    $region48: #{tpu_custom_call.1} parent=1 // pred_region
      %102 = dma.done [#allocation9], 128
    $region49: #{tpu_custom_call.1} parent=1 // pred_fallthru
      _
    %v104 = vld [vmem:[#allocation5] sm:$0xf]
    %v105 = vld [vmem:[#allocation5 + $0x4] sm:$0xf]
    %v106 = vld [vmem:[#allocation5 + $0x8] sm:$0xf]
    %v107 = vld [vmem:[#allocation5 + $0xc] sm:$0xf]
    %s108 = scalar_lea.vmem [#allocation5], 16
    %v109 = vld [vmem:[%s108] sm:$0xf]
    %v110 = vld [vmem:[%s108 + $0x4] sm:$0xf]
    %v111 = vld [vmem:[%s108 + $0x8] sm:$0xf]
    %v112 = vld [vmem:[%s108 + $0xc] sm:$0xf]
    %v113 = vld [vmem:[#allocation7] sm:$0xf]
    %v114 = vld [vmem:[#allocation7 + $0x4] sm:$0xf]
    %v115 = vld [vmem:[#allocation7 + $0x8] sm:$0xf]
    %v116 = vld [vmem:[#allocation7 + $0xc] sm:$0xf]
    %v117 = vld [vmem:[#allocation8] sm:$0xff]
    %s118 = scalar_lea.vmem [#allocation8], 8
    %v119 = vld [vmem:[%s118] sm:$0xff]
    %v120 = vld [vmem:[%s0] sm:$0xff]
    %s121 = scalar_lea.vmem %s0, 8
    %v122 = vld [vmem:[%s121] sm:$0xff]
    %v123 = vld [vmem:[#allocation2] sm:$0xff]
    %s124 = scalar_lea.vmem [#allocation2], 8
    %v125 = vld [vmem:[%s124] sm:$0xff]
    %v126 = vpack.c.bf16 %v120, %v120
    %v131 = vunpack.c.l.b16 %v104
    %v132 = vunpack.c.l.b16 %v105
    %v133 = vunpack.c.l.b16 %v106
    %v134 = vunpack.c.l.b16 %v107
    %v135 = vpack.c.b16 %v132, %v131
    %v136 = vpack.c.b16 %v134, %v133
    %vm139 = vcmask 261120
    %v141 = vsel %vm139, %v126, 0
    %143 = vmatpush.bf16.msra.mxu0 0
    %144 = vmatpush.bf16.msra.mxu0 0
    %145 = vmatpush.bf16.msra.mxu0 0
    %146 = vmatpush.bf16.msra.mxu0 0
    %147 = vmatpush.bf16.msra.mxu0 0
    %148 = vmatpush.bf16.msra.mxu0 0
    %149 = vmatpush.bf16.msra.mxu0 %v136
    %150 = vmatpush.bf16.msra.mxu0 %v135
    %151 = vmatmul.bf16.gmra.mxu0 %v141
    %v152 = vpop.f32.mrf.mxu0
    %v153 = vadd.f32 %v117, %v152
    %v154 = vpop.f32.mrf.mxu0
    %155 = vdwg.mxu0
    %v156 = vxor.u32 %v153, 2147483648
    %v157 = vmul.f32 %v156, 1.442695
    %v158 = vpow.pop %v157
    %v159 = vadd.f32 %v158, 1.0
    %v160 = vrcp.pop %v159
    %v161 = vmul.f32 %v159, %v160
    %v162 = vsub.f32 1.0, %v161
    %v163 = vmul.f32 %v160, %v162
    %v164 = vadd.f32 %v160, %v163
    %vm165 = vweird.f32 %v159
    %vm166 = vweird.f32 %v160
    %vm167 = vmor %vm165, %vm166
    %v168 = vsel %vm167, %v160, %v164
    %v169 = vand.u32 2147483647, %v159
    %vm170 = vcmp.eq.f32.partialorder %v169, 8.507059e+37
    %v171 = vand.u32 %v159, 2147483648
    %v172 = vor.u32 1.1754944e-38, %v171
    %v173 = vsel %vm170, %v172, %v168
    %v174 = vmul.f32 1.0, %v173
    %v175 = vmul.f32 %v174, 2.0
    %v176 = vsub.f32 %v175, 1.0
    %178 = vrot.lane.b32.xlu0 %v123, 32
    %v179 = vpop.permute.xlu0 %178
    %v181 = vmul.f32 %v174, %v179
    %183 = vrot.lane.b32.xlu0 %v176, 64
    %v184 = vpop.permute.xlu0 %183
    %v186 = vmul.f32 %v174, %v184
    %188 = vrot.lane.b32.xlu0 %v186, 32
    %v189 = vpop.permute.xlu0 %188
    %v191 = vadd.f32 %v181, %v189
    %v192 = vtanh.pop %v191
    %194 = vrot.lane.b32.xlu0 %v192, 64
    %v195 = vpop.permute.xlu0 %194
    %v197 = vmul.f32 %v174, %v195
    %v198 = vpack.c.bf16 %v197, %v197
    %200 = vrot.lane.b32.xlu0 %v198, 32
    %v201 = vpop.permute.xlu0 %200
    %v203 = vsel %vm139, %v201, 0
    %205 = vmatpush.bf16.msra.mxu0 0
    %206 = vmatpush.bf16.msra.mxu0 0
    %207 = vmatpush.bf16.msra.mxu0 0
    %208 = vmatpush.bf16.msra.mxu0 0
    %209 = vmatpush.bf16.msra.mxu0 0
    %210 = vmatpush.bf16.msra.mxu0 0
    %211 = vmatpush.bf16.msra.mxu0 %v136
    %212 = vmatpush.bf16.msra.mxu0 %v135
    %213 = vmatmul.bf16.gmra.mxu0 %v203
    %v214 = vpop.f32.mrf.mxu0
    %v215 = vadd.f32 %v117, %v214
    %v216 = vpop.f32.mrf.mxu0
    %217 = vdwg.mxu0
    %v218 = vpack.c.bf16 %v122, %v122
    %v223 = vunpack.c.l.b16 %v109
    %v224 = vunpack.c.l.b16 %v110
    %v225 = vunpack.c.l.b16 %v111
    %v226 = vunpack.c.l.b16 %v112
    %v227 = vpack.c.b16 %v224, %v223
    %v228 = vpack.c.b16 %v226, %v225
    %v232 = vsel %vm139, %v218, 0
    %234 = vmatpush.bf16.msra.mxu0 0
    %235 = vmatpush.bf16.msra.mxu0 0
    %236 = vmatpush.bf16.msra.mxu0 0
    %237 = vmatpush.bf16.msra.mxu0 0
    %238 = vmatpush.bf16.msra.mxu0 0
    %239 = vmatpush.bf16.msra.mxu0 0
    %240 = vmatpush.bf16.msra.mxu0 %v228
    %241 = vmatpush.bf16.msra.mxu0 %v227
    %242 = vmatmul.bf16.gmra.mxu0 %v232
    %v243 = vpop.f32.mrf.mxu0
    %v244 = vadd.f32 %v119, %v243
    %v245 = vpop.f32.mrf.mxu0
    %246 = vdwg.mxu0
    %v251 = vunpack.c.l.b16 %v113
    %v252 = vunpack.c.l.b16 %v114
    %v253 = vunpack.c.l.b16 %v115
    %v254 = vunpack.c.l.b16 %v116
    %v255 = vpack.c.b16 %v252, %v251
    %v256 = vpack.c.b16 %v254, %v253
    %259 = vmatpush.bf16.msra.mxu0 0
    %260 = vmatpush.bf16.msra.mxu0 0
    %261 = vmatpush.bf16.msra.mxu0 0
    %262 = vmatpush.bf16.msra.mxu0 0
    %263 = vmatpush.bf16.msra.mxu0 0
    %264 = vmatpush.bf16.msra.mxu0 0
    %265 = vmatpush.bf16.msra.mxu0 %v256
    %266 = vmatpush.bf16.msra.mxu0 %v255
    %267 = vmatmul.bf16.gmra.mxu0 %v203
    %v268 = vpop.f32.mrf.mxu0
    %v269 = vadd.f32 0.0, %v268
    %v270 = vpop.f32.mrf.mxu0
    %271 = vdwg.mxu0
    %v272 = vadd.f32 %v244, %v269
    %v273 = vxor.u32 %v215, 2147483648
    %v274 = vmul.f32 %v273, 1.442695
    %v275 = vpow.pop %v274
    %v276 = vadd.f32 %v275, 1.0
    %v277 = vrcp.pop %v276
    %v278 = vmul.f32 %v276, %v277
    %v279 = vsub.f32 1.0, %v278
    %v280 = vmul.f32 %v277, %v279
    %v281 = vadd.f32 %v277, %v280
    %vm282 = vweird.f32 %v276
    %vm283 = vweird.f32 %v277
    %vm284 = vmor %vm282, %vm283
    %v285 = vsel %vm284, %v277, %v281
    %v286 = vand.u32 2147483647, %v276
    %vm287 = vcmp.eq.f32.partialorder %v286, 8.507059e+37
    %v288 = vand.u32 %v276, 2147483648
    %v289 = vor.u32 1.1754944e-38, %v288
    %v290 = vsel %vm287, %v289, %v285
    %v291 = vmul.f32 1.0, %v290
    %v292 = vmul.f32 %v291, 2.0
    %v293 = vsub.f32 %v292, 1.0
    %v294 = vmul.f32 %v291, %v191
    %296 = vrot.lane.b32.xlu0 %v293, 64
    %v297 = vpop.permute.xlu0 %296
    %v299 = vmul.f32 %v291, %v297
    %301 = vrot.lane.b32.xlu0 %v299, 32
    %v302 = vpop.permute.xlu0 %301
    %v304 = vadd.f32 %v294, %v302
    %v305 = vtanh.pop %v304
    %307 = vrot.lane.b32.xlu0 %v305, 64
    %v308 = vpop.permute.xlu0 %307
    %v310 = vmul.f32 %v291, %v308
    %v311 = vxor.u32 %v272, 2147483648
    %v312 = vmul.f32 %v311, 1.442695
    %v313 = vpow.pop %v312
    %v314 = vadd.f32 %v313, 1.0
    %v315 = vrcp.pop %v314
    %v316 = vmul.f32 %v314, %v315
    %v317 = vsub.f32 1.0, %v316
    %v318 = vmul.f32 %v315, %v317
    %v319 = vadd.f32 %v315, %v318
    %vm320 = vweird.f32 %v314
    %vm321 = vweird.f32 %v315
    %vm322 = vmor %vm320, %vm321
    %v323 = vsel %vm322, %v315, %v319
    %v324 = vand.u32 2147483647, %v314
    %vm325 = vcmp.eq.f32.partialorder %v324, 8.507059e+37
    %v326 = vand.u32 %v314, 2147483648
    %v327 = vor.u32 1.1754944e-38, %v326
    %v328 = vsel %vm325, %v327, %v323
    %v329 = vmul.f32 1.0, %v328
    %v330 = vmul.f32 %v329, 2.0
    %v331 = vsub.f32 %v330, 1.0
    %333 = vrot.lane.b32.xlu0 %v125, 32
    %v334 = vpop.permute.xlu0 %333
    %v336 = vmul.f32 %v329, %v334
    %338 = vrot.lane.b32.xlu0 %v331, 64
    %v339 = vpop.permute.xlu0 %338
    %v341 = vmul.f32 %v329, %v339
    %343 = vrot.lane.b32.xlu0 %v341, 32
    %v344 = vpop.permute.xlu0 %343
    %v346 = vadd.f32 %v336, %v344
    %v347 = vtanh.pop %v346
    %349 = vrot.lane.b32.xlu0 %v347, 64
    %v350 = vpop.permute.xlu0 %349
    %v352 = vmul.f32 %v329, %v350
    %v353 = vpack.c.bf16 %v310, %v310
    %355 = vrot.lane.b32.xlu0 %v353, 32
    %v356 = vpop.permute.xlu0 %355
    %v358 = vsel %vm139, %v356, 0
    %360 = vmatpush.bf16.msra.mxu0 0
    %361 = vmatpush.bf16.msra.mxu0 0
    %362 = vmatpush.bf16.msra.mxu0 0
    %363 = vmatpush.bf16.msra.mxu0 0
    %364 = vmatpush.bf16.msra.mxu0 0
    %365 = vmatpush.bf16.msra.mxu0 0
    %366 = vmatpush.bf16.msra.mxu0 %v136
    %367 = vmatpush.bf16.msra.mxu0 %v135
    %368 = vmatmul.bf16.gmra.mxu0 %v358
    %v369 = vpop.f32.mrf.mxu0
    %v370 = vadd.f32 %v117, %v369
    %v371 = vpop.f32.mrf.mxu0
    %372 = vdwg.mxu0
    %v373 = vpack.c.bf16 %v352, %v352
    %375 = vrot.lane.b32.xlu0 %v373, 32
    %v376 = vpop.permute.xlu0 %375
    %v378 = vsel %vm139, %v376, 0
    %380 = vmatpush.bf16.msra.mxu0 0
    %381 = vmatpush.bf16.msra.mxu0 0
    %382 = vmatpush.bf16.msra.mxu0 0
    %383 = vmatpush.bf16.msra.mxu0 0
    %384 = vmatpush.bf16.msra.mxu0 0
    %385 = vmatpush.bf16.msra.mxu0 0
    %386 = vmatpush.bf16.msra.mxu0 %v228
    %387 = vmatpush.bf16.msra.mxu0 %v227
    %388 = vmatmul.bf16.gmra.mxu0 %v378
    %v389 = vpop.f32.mrf.mxu0
    %v390 = vadd.f32 %v119, %v389
    %v391 = vpop.f32.mrf.mxu0
    %392 = vdwg.mxu0
    %393 = vmatpush.bf16.msra.mxu0 0
    %394 = vmatpush.bf16.msra.mxu0 0
    %395 = vmatpush.bf16.msra.mxu0 0
    %396 = vmatpush.bf16.msra.mxu0 0
    %397 = vmatpush.bf16.msra.mxu0 0
    %398 = vmatpush.bf16.msra.mxu0 0
    %399 = vmatpush.bf16.msra.mxu0 %v256
    %400 = vmatpush.bf16.msra.mxu0 %v255
    %401 = vmatmul.bf16.gmra.mxu0 %v358
    %v402 = vpop.f32.mrf.mxu0
    %v403 = vadd.f32 0.0, %v402
    %v404 = vpop.f32.mrf.mxu0
    %405 = vdwg.mxu0
    %v406 = vadd.f32 %v390, %v403
    %v407 = vxor.u32 %v370, 2147483648
    %v408 = vmul.f32 %v407, 1.442695
    %v409 = vpow.pop %v408
    %v410 = vadd.f32 %v409, 1.0
    %v411 = vrcp.pop %v410
    %v412 = vmul.f32 %v410, %v411
    %v413 = vsub.f32 1.0, %v412
    %v414 = vmul.f32 %v411, %v413
    %v415 = vadd.f32 %v411, %v414
    %vm416 = vweird.f32 %v410
    %vm417 = vweird.f32 %v411
    %vm418 = vmor %vm416, %vm417
    %v419 = vsel %vm418, %v411, %v415
    %v420 = vand.u32 2147483647, %v410
    %vm421 = vcmp.eq.f32.partialorder %v420, 8.507059e+37
    %v422 = vand.u32 %v410, 2147483648
    %v423 = vor.u32 1.1754944e-38, %v422
    %v424 = vsel %vm421, %v423, %v419
    %v425 = vmul.f32 1.0, %v424
    %v426 = vmul.f32 %v425, 2.0
    %v427 = vsub.f32 %v426, 1.0
    %v428 = vmul.f32 %v425, %v304
    %430 = vrot.lane.b32.xlu0 %v427, 64
    %v431 = vpop.permute.xlu0 %430
    %v433 = vmul.f32 %v425, %v431
    %435 = vrot.lane.b32.xlu0 %v433, 32
    %v436 = vpop.permute.xlu0 %435
    %v438 = vadd.f32 %v428, %v436
    %v439 = vtanh.pop %v438
    %441 = vrot.lane.b32.xlu0 %v439, 64
    %v442 = vpop.permute.xlu0 %441
    %v444 = vmul.f32 %v425, %v442
    %v445 = vxor.u32 %v406, 2147483648
    %v446 = vmul.f32 %v445, 1.442695
    %v447 = vpow.pop %v446
    %v448 = vadd.f32 %v447, 1.0
    %v449 = vrcp.pop %v448
    %v450 = vmul.f32 %v448, %v449
    %v451 = vsub.f32 1.0, %v450
    %v452 = vmul.f32 %v449, %v451
    %v453 = vadd.f32 %v449, %v452
    %vm454 = vweird.f32 %v448
    %vm455 = vweird.f32 %v449
    %vm456 = vmor %vm454, %vm455
    %v457 = vsel %vm456, %v449, %v453
    %v458 = vand.u32 2147483647, %v448
    %vm459 = vcmp.eq.f32.partialorder %v458, 8.507059e+37
    %v460 = vand.u32 %v448, 2147483648
    %v461 = vor.u32 1.1754944e-38, %v460
    %v462 = vsel %vm459, %v461, %v457
    %v463 = vmul.f32 1.0, %v462
    %v464 = vmul.f32 %v463, 2.0
    %v465 = vsub.f32 %v464, 1.0
    %v466 = vmul.f32 %v463, %v346
    %468 = vrot.lane.b32.xlu0 %v465, 64
    %v469 = vpop.permute.xlu0 %468
    %v471 = vmul.f32 %v463, %v469
    %473 = vrot.lane.b32.xlu0 %v471, 32
    %v474 = vpop.permute.xlu0 %473
    %v476 = vadd.f32 %v466, %v474
    %v477 = vtanh.pop %v476
    %479 = vrot.lane.b32.xlu0 %v477, 64
    %v480 = vpop.permute.xlu0 %479
    %v482 = vmul.f32 %v463, %v480
    %v483 = vpack.c.bf16 %v444, %v444
    %485 = vrot.lane.b32.xlu0 %v483, 32
    %v486 = vpop.permute.xlu0 %485
    %v488 = vsel %vm139, %v486, 0
    %490 = vmatpush.bf16.msra.mxu0 0
    %491 = vmatpush.bf16.msra.mxu0 0
    %492 = vmatpush.bf16.msra.mxu0 0
    %493 = vmatpush.bf16.msra.mxu0 0
    %494 = vmatpush.bf16.msra.mxu0 0
    %495 = vmatpush.bf16.msra.mxu0 0
    %496 = vmatpush.bf16.msra.mxu0 %v136
    %497 = vmatpush.bf16.msra.mxu0 %v135
    %498 = vmatmul.bf16.gmra.mxu0 %v488
    %v499 = vpop.f32.mrf.mxu0
    %v500 = vadd.f32 %v117, %v499
    %v501 = vpop.f32.mrf.mxu0
    %502 = vdwg.mxu0
    %v503 = vpack.c.bf16 %v482, %v482
    %505 = vrot.lane.b32.xlu0 %v503, 32
    %v506 = vpop.permute.xlu0 %505
    %v508 = vsel %vm139, %v506, 0
    %510 = vmatpush.bf16.msra.mxu0 0
    %511 = vmatpush.bf16.msra.mxu0 0
    %512 = vmatpush.bf16.msra.mxu0 0
    %513 = vmatpush.bf16.msra.mxu0 0
    %514 = vmatpush.bf16.msra.mxu0 0
    %515 = vmatpush.bf16.msra.mxu0 0
    %516 = vmatpush.bf16.msra.mxu0 %v228
    %517 = vmatpush.bf16.msra.mxu0 %v227
    %518 = vmatmul.bf16.gmra.mxu0 %v508
    %v519 = vpop.f32.mrf.mxu0
    %v520 = vadd.f32 %v119, %v519
    %v521 = vpop.f32.mrf.mxu0
    %522 = vdwg.mxu0
    %523 = vmatpush.bf16.msra.mxu0 0
    %524 = vmatpush.bf16.msra.mxu0 0
    %525 = vmatpush.bf16.msra.mxu0 0
    %526 = vmatpush.bf16.msra.mxu0 0
    %527 = vmatpush.bf16.msra.mxu0 0
    %528 = vmatpush.bf16.msra.mxu0 0
    %529 = vmatpush.bf16.msra.mxu0 %v256
    %530 = vmatpush.bf16.msra.mxu0 %v255
    %531 = vmatmul.bf16.gmra.mxu0 %v488
    %v532 = vpop.f32.mrf.mxu0
    %v533 = vadd.f32 0.0, %v532
    %v534 = vpop.f32.mrf.mxu0
    %535 = vdwg.mxu0
    %v536 = vadd.f32 %v520, %v533
    %v537 = vxor.u32 %v500, 2147483648
    %v538 = vmul.f32 %v537, 1.442695
    %v539 = vpow.pop %v538
    %v540 = vadd.f32 %v539, 1.0
    %v541 = vrcp.pop %v540
    %v542 = vmul.f32 %v540, %v541
    %v543 = vsub.f32 1.0, %v542
    %v544 = vmul.f32 %v541, %v543
    %v545 = vadd.f32 %v541, %v544
    %vm546 = vweird.f32 %v540
    %vm547 = vweird.f32 %v541
    %vm548 = vmor %vm546, %vm547
    %v549 = vsel %vm548, %v541, %v545
    %v550 = vand.u32 2147483647, %v540
    %vm551 = vcmp.eq.f32.partialorder %v550, 8.507059e+37
    %v552 = vand.u32 %v540, 2147483648
    %v553 = vor.u32 1.1754944e-38, %v552
    %v554 = vsel %vm551, %v553, %v549
    %v555 = vmul.f32 1.0, %v554
    %v556 = vmul.f32 %v555, 2.0
    %v557 = vsub.f32 %v556, 1.0
    %v558 = vmul.f32 %v555, %v438
    %560 = vrot.lane.b32.xlu0 %v557, 64
    %v561 = vpop.permute.xlu0 %560
    %v563 = vmul.f32 %v555, %v561
    %565 = vrot.lane.b32.xlu0 %v563, 32
    %v566 = vpop.permute.xlu0 %565
    %v568 = vadd.f32 %v558, %v566
    %v569 = vtanh.pop %v568
    %571 = vrot.lane.b32.xlu0 %v569, 64
    %v572 = vpop.permute.xlu0 %571
    %v574 = vmul.f32 %v555, %v572
    %v575 = vxor.u32 %v536, 2147483648
    %v576 = vmul.f32 %v575, 1.442695
    %v577 = vpow.pop %v576
    %v578 = vadd.f32 %v577, 1.0
    %v579 = vrcp.pop %v578
    %v580 = vmul.f32 %v578, %v579
    %v581 = vsub.f32 1.0, %v580
    %v582 = vmul.f32 %v579, %v581
    %v583 = vadd.f32 %v579, %v582
    %vm584 = vweird.f32 %v578
    %vm585 = vweird.f32 %v579
    %vm586 = vmor %vm584, %vm585
    %v587 = vsel %vm586, %v579, %v583
    %v588 = vand.u32 2147483647, %v578
    %vm589 = vcmp.eq.f32.partialorder %v588, 8.507059e+37
    %v590 = vand.u32 %v578, 2147483648
    %v591 = vor.u32 1.1754944e-38, %v590
    %v592 = vsel %vm589, %v591, %v587
    %v593 = vmul.f32 1.0, %v592
    %v594 = vmul.f32 %v593, 2.0
    %v595 = vsub.f32 %v594, 1.0
    %v596 = vmul.f32 %v593, %v476
    %598 = vrot.lane.b32.xlu0 %v595, 64
    %v599 = vpop.permute.xlu0 %598
    %v601 = vmul.f32 %v593, %v599
    %603 = vrot.lane.b32.xlu0 %v601, 32
    %v604 = vpop.permute.xlu0 %603
    %v606 = vadd.f32 %v596, %v604
    %v607 = vtanh.pop %v606
    %609 = vrot.lane.b32.xlu0 %v607, 64
    %v610 = vpop.permute.xlu0 %609
    %v612 = vmul.f32 %v593, %v610
    %v613 = vpack.c.bf16 %v574, %v574
    %615 = vrot.lane.b32.xlu0 %v613, 32
    %v616 = vpop.permute.xlu0 %615
    %v618 = vsel %vm139, %v616, 0
    %620 = vmatpush.bf16.msra.mxu0 0
    %621 = vmatpush.bf16.msra.mxu0 0
    %622 = vmatpush.bf16.msra.mxu0 0
    %623 = vmatpush.bf16.msra.mxu0 0
    %624 = vmatpush.bf16.msra.mxu0 0
    %625 = vmatpush.bf16.msra.mxu0 0
    %626 = vmatpush.bf16.msra.mxu0 %v136
    %627 = vmatpush.bf16.msra.mxu0 %v135
    %628 = vmatmul.bf16.gmra.mxu0 %v618
    %v629 = vpop.f32.mrf.mxu0
    %v630 = vadd.f32 %v117, %v629
    %v631 = vpop.f32.mrf.mxu0
    %632 = vdwg.mxu0
    %v633 = vpack.c.bf16 %v612, %v612
    %635 = vrot.lane.b32.xlu0 %v633, 32
    %v636 = vpop.permute.xlu0 %635
    %v638 = vsel %vm139, %v636, 0
    %640 = vmatpush.bf16.msra.mxu0 0
    %641 = vmatpush.bf16.msra.mxu0 0
    %642 = vmatpush.bf16.msra.mxu0 0
    %643 = vmatpush.bf16.msra.mxu0 0
    %644 = vmatpush.bf16.msra.mxu0 0
    %645 = vmatpush.bf16.msra.mxu0 0
    %646 = vmatpush.bf16.msra.mxu0 %v228
    %647 = vmatpush.bf16.msra.mxu0 %v227
    %648 = vmatmul.bf16.gmra.mxu0 %v638
    %v649 = vpop.f32.mrf.mxu0
    %v650 = vadd.f32 %v119, %v649
    %v651 = vpop.f32.mrf.mxu0
    %652 = vdwg.mxu0
    %653 = vmatpush.bf16.msra.mxu0 0
    %654 = vmatpush.bf16.msra.mxu0 0
    %655 = vmatpush.bf16.msra.mxu0 0
    %656 = vmatpush.bf16.msra.mxu0 0
    %657 = vmatpush.bf16.msra.mxu0 0
    %658 = vmatpush.bf16.msra.mxu0 0
    %659 = vmatpush.bf16.msra.mxu0 %v256
    %660 = vmatpush.bf16.msra.mxu0 %v255
    %661 = vmatmul.bf16.gmra.mxu0 %v618
    %v662 = vpop.f32.mrf.mxu0
    %v663 = vadd.f32 0.0, %v662
    %v664 = vpop.f32.mrf.mxu0
    %665 = vdwg.mxu0
    %v666 = vadd.f32 %v650, %v663
    %v667 = vxor.u32 %v630, 2147483648
    %v668 = vmul.f32 %v667, 1.442695
    %v669 = vpow.pop %v668
    %v670 = vadd.f32 %v669, 1.0
    %v671 = vrcp.pop %v670
    %v672 = vmul.f32 %v670, %v671
    %v673 = vsub.f32 1.0, %v672
    %v674 = vmul.f32 %v671, %v673
    %v675 = vadd.f32 %v671, %v674
    %vm676 = vweird.f32 %v670
    %vm677 = vweird.f32 %v671
    %vm678 = vmor %vm676, %vm677
    %v679 = vsel %vm678, %v671, %v675
    %v680 = vand.u32 2147483647, %v670
    %vm681 = vcmp.eq.f32.partialorder %v680, 8.507059e+37
    %v682 = vand.u32 %v670, 2147483648
    %v683 = vor.u32 1.1754944e-38, %v682
    %v684 = vsel %vm681, %v683, %v679
    %v685 = vmul.f32 1.0, %v684
    %v686 = vmul.f32 %v685, 2.0
    %v687 = vsub.f32 %v686, 1.0
    %v688 = vmul.f32 %v685, %v568
    %690 = vrot.lane.b32.xlu0 %v687, 64
    %v691 = vpop.permute.xlu0 %690
    %v693 = vmul.f32 %v685, %v691
    %695 = vrot.lane.b32.xlu0 %v693, 32
    %v696 = vpop.permute.xlu0 %695
    %v698 = vadd.f32 %v688, %v696
    %v699 = vtanh.pop %v698
    %701 = vrot.lane.b32.xlu0 %v699, 64
    %v702 = vpop.permute.xlu0 %701
    %v704 = vmul.f32 %v685, %v702
    %v705 = vxor.u32 %v666, 2147483648
    %v706 = vmul.f32 %v705, 1.442695
    %v707 = vpow.pop %v706
    %v708 = vadd.f32 %v707, 1.0
    %v709 = vrcp.pop %v708
    %v710 = vmul.f32 %v708, %v709
    %v711 = vsub.f32 1.0, %v710
    %v712 = vmul.f32 %v709, %v711
    %v713 = vadd.f32 %v709, %v712
    %vm714 = vweird.f32 %v708
    %vm715 = vweird.f32 %v709
    %vm716 = vmor %vm714, %vm715
    %v717 = vsel %vm716, %v709, %v713
    %v718 = vand.u32 2147483647, %v708
    %vm719 = vcmp.eq.f32.partialorder %v718, 8.507059e+37
    %v720 = vand.u32 %v708, 2147483648
    %v721 = vor.u32 1.1754944e-38, %v720
    %v722 = vsel %vm719, %v721, %v717
    %v723 = vmul.f32 1.0, %v722
    %v724 = vmul.f32 %v723, 2.0
    %v725 = vsub.f32 %v724, 1.0
    %v726 = vmul.f32 %v723, %v606
    %728 = vrot.lane.b32.xlu0 %v725, 64
    %v729 = vpop.permute.xlu0 %728
    %v731 = vmul.f32 %v723, %v729
    %733 = vrot.lane.b32.xlu0 %v731, 32
    %v734 = vpop.permute.xlu0 %733
    %v736 = vadd.f32 %v726, %v734
    %v737 = vtanh.pop %v736
    %739 = vrot.lane.b32.xlu0 %v737, 64
    %v740 = vpop.permute.xlu0 %739
    %v742 = vmul.f32 %v723, %v740
    %v743 = vpack.c.bf16 %v704, %v704
    %745 = vrot.lane.b32.xlu0 %v743, 32
    %v746 = vpop.permute.xlu0 %745
    %v748 = vsel %vm139, %v746, 0
    %750 = vmatpush.bf16.msra.mxu0 0
    %751 = vmatpush.bf16.msra.mxu0 0
    %752 = vmatpush.bf16.msra.mxu0 0
    %753 = vmatpush.bf16.msra.mxu0 0
    %754 = vmatpush.bf16.msra.mxu0 0
    %755 = vmatpush.bf16.msra.mxu0 0
    %756 = vmatpush.bf16.msra.mxu0 %v136
    %757 = vmatpush.bf16.msra.mxu0 %v135
    %758 = vmatmul.bf16.gmra.mxu0 %v748
    %v759 = vpop.f32.mrf.mxu0
    %v760 = vadd.f32 %v117, %v759
    %v761 = vpop.f32.mrf.mxu0
    %762 = vdwg.mxu0
    %v763 = vpack.c.bf16 %v742, %v742
    %765 = vrot.lane.b32.xlu0 %v763, 32
    %v766 = vpop.permute.xlu0 %765
    %v768 = vsel %vm139, %v766, 0
    %770 = vmatpush.bf16.msra.mxu0 0
    %771 = vmatpush.bf16.msra.mxu0 0
    %772 = vmatpush.bf16.msra.mxu0 0
    %773 = vmatpush.bf16.msra.mxu0 0
    %774 = vmatpush.bf16.msra.mxu0 0
    %775 = vmatpush.bf16.msra.mxu0 0
    %776 = vmatpush.bf16.msra.mxu0 %v228
    %777 = vmatpush.bf16.msra.mxu0 %v227
    %778 = vmatmul.bf16.gmra.mxu0 %v768
    %v779 = vpop.f32.mrf.mxu0
    %v780 = vadd.f32 %v119, %v779
    %v781 = vpop.f32.mrf.mxu0
    %782 = vdwg.mxu0
    %783 = vmatpush.bf16.msra.mxu0 0
    %784 = vmatpush.bf16.msra.mxu0 0
    %785 = vmatpush.bf16.msra.mxu0 0
    %786 = vmatpush.bf16.msra.mxu0 0
    %787 = vmatpush.bf16.msra.mxu0 0
    %788 = vmatpush.bf16.msra.mxu0 0
    %789 = vmatpush.bf16.msra.mxu0 %v256
    %790 = vmatpush.bf16.msra.mxu0 %v255
    %791 = vmatmul.bf16.gmra.mxu0 %v748
    %v792 = vpop.f32.mrf.mxu0
    %v793 = vadd.f32 0.0, %v792
    %v794 = vpop.f32.mrf.mxu0
    %795 = vdwg.mxu0
    %v796 = vadd.f32 %v780, %v793
    %v797 = vxor.u32 %v760, 2147483648
    %v798 = vmul.f32 %v797, 1.442695
    %v799 = vpow.pop %v798
    %v800 = vadd.f32 %v799, 1.0
    %v801 = vrcp.pop %v800
    %v802 = vmul.f32 %v800, %v801
    %v803 = vsub.f32 1.0, %v802
    %v804 = vmul.f32 %v801, %v803
    %v805 = vadd.f32 %v801, %v804
    %vm806 = vweird.f32 %v800
    %vm807 = vweird.f32 %v801
    %vm808 = vmor %vm806, %vm807
    %v809 = vsel %vm808, %v801, %v805
    %v810 = vand.u32 2147483647, %v800
    %vm811 = vcmp.eq.f32.partialorder %v810, 8.507059e+37
    %v812 = vand.u32 %v800, 2147483648
    %v813 = vor.u32 1.1754944e-38, %v812
    %v814 = vsel %vm811, %v813, %v809
    %v815 = vmul.f32 1.0, %v814
    %v816 = vmul.f32 %v815, 2.0
    %v817 = vsub.f32 %v816, 1.0
    %v818 = vmul.f32 %v815, %v698
    %820 = vrot.lane.b32.xlu0 %v817, 64
    %v821 = vpop.permute.xlu0 %820
    %v823 = vmul.f32 %v815, %v821
    %825 = vrot.lane.b32.xlu0 %v823, 32
    %v826 = vpop.permute.xlu0 %825
    %v828 = vadd.f32 %v818, %v826
    %v829 = vtanh.pop %v828
    %831 = vrot.lane.b32.xlu0 %v829, 64
    %v832 = vpop.permute.xlu0 %831
    %v834 = vmul.f32 %v815, %v832
    %v835 = vxor.u32 %v796, 2147483648
    %v836 = vmul.f32 %v835, 1.442695
    %v837 = vpow.pop %v836
    %v838 = vadd.f32 %v837, 1.0
    %v839 = vrcp.pop %v838
    %v840 = vmul.f32 %v838, %v839
    %v841 = vsub.f32 1.0, %v840
    %v842 = vmul.f32 %v839, %v841
    %v843 = vadd.f32 %v839, %v842
    %vm844 = vweird.f32 %v838
    %vm845 = vweird.f32 %v839
    %vm846 = vmor %vm844, %vm845
    %v847 = vsel %vm846, %v839, %v843
    %v848 = vand.u32 2147483647, %v838
    %vm849 = vcmp.eq.f32.partialorder %v848, 8.507059e+37
    %v850 = vand.u32 %v838, 2147483648
    %v851 = vor.u32 1.1754944e-38, %v850
    %v852 = vsel %vm849, %v851, %v847
    %v853 = vmul.f32 1.0, %v852
    %v854 = vmul.f32 %v853, 2.0
    %v855 = vsub.f32 %v854, 1.0
    %v856 = vmul.f32 %v853, %v736
    %858 = vrot.lane.b32.xlu0 %v855, 64
    %v859 = vpop.permute.xlu0 %858
    %v861 = vmul.f32 %v853, %v859
    %863 = vrot.lane.b32.xlu0 %v861, 32
    %v864 = vpop.permute.xlu0 %863
    %v866 = vadd.f32 %v856, %v864
    %v867 = vtanh.pop %v866
    %869 = vrot.lane.b32.xlu0 %v867, 64
    %v870 = vpop.permute.xlu0 %869
    %v872 = vmul.f32 %v853, %v870
    %v873 = vpack.c.bf16 %v834, %v834
    %875 = vrot.lane.b32.xlu0 %v873, 32
    %v876 = vpop.permute.xlu0 %875
    %v878 = vsel %vm139, %v876, 0
    %880 = vmatpush.bf16.msra.mxu0 0
    %881 = vmatpush.bf16.msra.mxu0 0
    %882 = vmatpush.bf16.msra.mxu0 0
    %883 = vmatpush.bf16.msra.mxu0 0
    %884 = vmatpush.bf16.msra.mxu0 0
    %885 = vmatpush.bf16.msra.mxu0 0
    %886 = vmatpush.bf16.msra.mxu0 %v136
    %887 = vmatpush.bf16.msra.mxu0 %v135
    %888 = vmatmul.bf16.gmra.mxu0 %v878
    %v889 = vpop.f32.mrf.mxu0
    %v890 = vadd.f32 %v117, %v889
    %v891 = vpop.f32.mrf.mxu0
    %892 = vdwg.mxu0
    %v893 = vpack.c.bf16 %v872, %v872
    %895 = vrot.lane.b32.xlu0 %v893, 32
    %v896 = vpop.permute.xlu0 %895
    %v898 = vsel %vm139, %v896, 0
    %900 = vmatpush.bf16.msra.mxu0 0
    %901 = vmatpush.bf16.msra.mxu0 0
    %902 = vmatpush.bf16.msra.mxu0 0
    %903 = vmatpush.bf16.msra.mxu0 0
    %904 = vmatpush.bf16.msra.mxu0 0
    %905 = vmatpush.bf16.msra.mxu0 0
    %906 = vmatpush.bf16.msra.mxu0 %v228
    %907 = vmatpush.bf16.msra.mxu0 %v227
    %908 = vmatmul.bf16.gmra.mxu0 %v898
    %v909 = vpop.f32.mrf.mxu0
    %v910 = vadd.f32 %v119, %v909
    %v911 = vpop.f32.mrf.mxu0
    %912 = vdwg.mxu0
    %913 = vmatpush.bf16.msra.mxu0 0
    %914 = vmatpush.bf16.msra.mxu0 0
    %915 = vmatpush.bf16.msra.mxu0 0
    %916 = vmatpush.bf16.msra.mxu0 0
    %917 = vmatpush.bf16.msra.mxu0 0
    %918 = vmatpush.bf16.msra.mxu0 0
    %919 = vmatpush.bf16.msra.mxu0 %v256
    %920 = vmatpush.bf16.msra.mxu0 %v255
    %921 = vmatmul.bf16.gmra.mxu0 %v878
    %v922 = vpop.f32.mrf.mxu0
    %v923 = vadd.f32 0.0, %v922
    %v924 = vpop.f32.mrf.mxu0
    %925 = vdwg.mxu0
    %v926 = vadd.f32 %v910, %v923
    %v927 = vxor.u32 %v890, 2147483648
    %v928 = vmul.f32 %v927, 1.442695
    %v929 = vpow.pop %v928
    %v930 = vadd.f32 %v929, 1.0
    %v931 = vrcp.pop %v930
    %v932 = vmul.f32 %v930, %v931
    %v933 = vsub.f32 1.0, %v932
    %v934 = vmul.f32 %v931, %v933
    %v935 = vadd.f32 %v931, %v934
    %vm936 = vweird.f32 %v930
    %vm937 = vweird.f32 %v931
    %vm938 = vmor %vm936, %vm937
    %v939 = vsel %vm938, %v931, %v935
    %v940 = vand.u32 2147483647, %v930
    %vm941 = vcmp.eq.f32.partialorder %v940, 8.507059e+37
    %v942 = vand.u32 %v930, 2147483648
    %v943 = vor.u32 1.1754944e-38, %v942
    %v944 = vsel %vm941, %v943, %v939
    %v945 = vmul.f32 1.0, %v944
    %v946 = vmul.f32 %v945, 2.0
    %v947 = vsub.f32 %v946, 1.0
    %v948 = vmul.f32 %v945, %v828
    %950 = vrot.lane.b32.xlu0 %v947, 64
    %v951 = vpop.permute.xlu0 %950
    %v953 = vmul.f32 %v945, %v951
    %955 = vrot.lane.b32.xlu0 %v953, 32
    %v956 = vpop.permute.xlu0 %955
    %v958 = vadd.f32 %v948, %v956
    %v959 = vtanh.pop %v958
    %961 = vrot.lane.b32.xlu0 %v959, 64
    %v962 = vpop.permute.xlu0 %961
    %v964 = vmul.f32 %v945, %v962
    %v965 = vxor.u32 %v926, 2147483648
    %v966 = vmul.f32 %v965, 1.442695
    %v967 = vpow.pop %v966
    %v968 = vadd.f32 %v967, 1.0
    %v969 = vrcp.pop %v968
    %v970 = vmul.f32 %v968, %v969
    %v971 = vsub.f32 1.0, %v970
    %v972 = vmul.f32 %v969, %v971
    %v973 = vadd.f32 %v969, %v972
    %vm974 = vweird.f32 %v968
    %vm975 = vweird.f32 %v969
    %vm976 = vmor %vm974, %vm975
    %v977 = vsel %vm976, %v969, %v973
    %v978 = vand.u32 2147483647, %v968
    %vm979 = vcmp.eq.f32.partialorder %v978, 8.507059e+37
    %v980 = vand.u32 %v968, 2147483648
    %v981 = vor.u32 1.1754944e-38, %v980
    %v982 = vsel %vm979, %v981, %v977
    %v983 = vmul.f32 1.0, %v982
    %v984 = vmul.f32 %v983, 2.0
    %v985 = vsub.f32 %v984, 1.0
    %v986 = vmul.f32 %v983, %v866
    %988 = vrot.lane.b32.xlu0 %v985, 64
    %v989 = vpop.permute.xlu0 %988
    %v991 = vmul.f32 %v983, %v989
    %993 = vrot.lane.b32.xlu0 %v991, 32
    %v994 = vpop.permute.xlu0 %993
    %v996 = vadd.f32 %v986, %v994
    %v997 = vtanh.pop %v996
    %999 = vrot.lane.b32.xlu0 %v997, 64
    %v1000 = vpop.permute.xlu0 %999
    %v1002 = vmul.f32 %v983, %v1000
    %v1003 = vpack.c.bf16 %v964, %v964
    %1005 = vrot.lane.b32.xlu0 %v1003, 32
    %v1006 = vpop.permute.xlu0 %1005
    %v1008 = vsel %vm139, %v1006, 0
    %1010 = vmatpush.bf16.msra.mxu0 0
    %1011 = vmatpush.bf16.msra.mxu0 0
    %1012 = vmatpush.bf16.msra.mxu0 0
    %1013 = vmatpush.bf16.msra.mxu0 0
    %1014 = vmatpush.bf16.msra.mxu0 0
    %1015 = vmatpush.bf16.msra.mxu0 0
    %1016 = vmatpush.bf16.msra.mxu0 %v136
    %1017 = vmatpush.bf16.msra.mxu0 %v135
    %1018 = vmatmul.bf16.gmra.mxu0 %v1008
    %v1019 = vpop.f32.mrf.mxu0
    %v1020 = vadd.f32 %v117, %v1019
    %v1021 = vpop.f32.mrf.mxu0
    %1022 = vdwg.mxu0
    %v1023 = vpack.c.bf16 %v1002, %v1002
    %1025 = vrot.lane.b32.xlu0 %v1023, 32
    %v1026 = vpop.permute.xlu0 %1025
    %v1028 = vsel %vm139, %v1026, 0
    %1030 = vmatpush.bf16.msra.mxu0 0
    %1031 = vmatpush.bf16.msra.mxu0 0
    %1032 = vmatpush.bf16.msra.mxu0 0
    %1033 = vmatpush.bf16.msra.mxu0 0
    %1034 = vmatpush.bf16.msra.mxu0 0
    %1035 = vmatpush.bf16.msra.mxu0 0
    %1036 = vmatpush.bf16.msra.mxu0 %v228
    %1037 = vmatpush.bf16.msra.mxu0 %v227
    %1038 = vmatmul.bf16.gmra.mxu0 %v1028
    %v1039 = vpop.f32.mrf.mxu0
    %v1040 = vadd.f32 %v119, %v1039
    %v1041 = vpop.f32.mrf.mxu0
    %1042 = vdwg.mxu0
    %1043 = vmatpush.bf16.msra.mxu0 0
    %1044 = vmatpush.bf16.msra.mxu0 0
    %1045 = vmatpush.bf16.msra.mxu0 0
    %1046 = vmatpush.bf16.msra.mxu0 0
    %1047 = vmatpush.bf16.msra.mxu0 0
    %1048 = vmatpush.bf16.msra.mxu0 0
    %1049 = vmatpush.bf16.msra.mxu0 %v256
    %1050 = vmatpush.bf16.msra.mxu0 %v255
    %1051 = vmatmul.bf16.gmra.mxu0 %v1008
    %v1052 = vpop.f32.mrf.mxu0
    %v1053 = vadd.f32 0.0, %v1052
    %v1054 = vpop.f32.mrf.mxu0
    %1055 = vdwg.mxu0
    %v1056 = vadd.f32 %v1040, %v1053
    %v1057 = vxor.u32 %v1020, 2147483648
    %v1058 = vmul.f32 %v1057, 1.442695
    %v1059 = vpow.pop %v1058
    %v1060 = vadd.f32 %v1059, 1.0
    %v1061 = vrcp.pop %v1060
    %v1062 = vmul.f32 %v1060, %v1061
    %v1063 = vsub.f32 1.0, %v1062
    %v1064 = vmul.f32 %v1061, %v1063
    %v1065 = vadd.f32 %v1061, %v1064
    %vm1066 = vweird.f32 %v1060
    %vm1067 = vweird.f32 %v1061
    %vm1068 = vmor %vm1066, %vm1067
    %v1069 = vsel %vm1068, %v1061, %v1065
    %v1070 = vand.u32 2147483647, %v1060
    %vm1071 = vcmp.eq.f32.partialorder %v1070, 8.507059e+37
    %v1072 = vand.u32 %v1060, 2147483648
    %v1073 = vor.u32 1.1754944e-38, %v1072
    %v1074 = vsel %vm1071, %v1073, %v1069
    %v1075 = vmul.f32 1.0, %v1074
    %v1076 = vmul.f32 %v1075, 2.0
    %v1077 = vsub.f32 %v1076, 1.0
    %v1078 = vmul.f32 %v1075, %v958
    %1080 = vrot.lane.b32.xlu0 %v1077, 64
    %v1081 = vpop.permute.xlu0 %1080
    %v1083 = vmul.f32 %v1075, %v1081
    %1085 = vrot.lane.b32.xlu0 %v1083, 32
    %v1086 = vpop.permute.xlu0 %1085
    %v1088 = vadd.f32 %v1078, %v1086
    %v1089 = vtanh.pop %v1088
    %1091 = vrot.lane.b32.xlu0 %v1089, 64
    %v1092 = vpop.permute.xlu0 %1091
    %v1094 = vmul.f32 %v1075, %v1092
    %v1095 = vxor.u32 %v1056, 2147483648
    %v1096 = vmul.f32 %v1095, 1.442695
    %v1097 = vpow.pop %v1096
    %v1098 = vadd.f32 %v1097, 1.0
    %v1099 = vrcp.pop %v1098
    %v1100 = vmul.f32 %v1098, %v1099
    %v1101 = vsub.f32 1.0, %v1100
    %v1102 = vmul.f32 %v1099, %v1101
    %v1103 = vadd.f32 %v1099, %v1102
    %vm1104 = vweird.f32 %v1098
    %vm1105 = vweird.f32 %v1099
    %vm1106 = vmor %vm1104, %vm1105
    %v1107 = vsel %vm1106, %v1099, %v1103
    %v1108 = vand.u32 2147483647, %v1098
    %vm1109 = vcmp.eq.f32.partialorder %v1108, 8.507059e+37
    %v1110 = vand.u32 %v1098, 2147483648
    %v1111 = vor.u32 1.1754944e-38, %v1110
    %v1112 = vsel %vm1109, %v1111, %v1107
    %v1113 = vmul.f32 1.0, %v1112
    %v1114 = vmul.f32 %v1113, 2.0
    %v1115 = vsub.f32 %v1114, 1.0
    %v1116 = vmul.f32 %v1113, %v996
    %1118 = vrot.lane.b32.xlu0 %v1115, 64
    %v1119 = vpop.permute.xlu0 %1118
    %v1121 = vmul.f32 %v1113, %v1119
    %1123 = vrot.lane.b32.xlu0 %v1121, 32
    %v1124 = vpop.permute.xlu0 %1123
    %v1126 = vadd.f32 %v1116, %v1124
    %v1127 = vtanh.pop %v1126
    %1129 = vrot.lane.b32.xlu0 %v1127, 64
    %v1130 = vpop.permute.xlu0 %1129
    %v1132 = vmul.f32 %v1113, %v1130
    %v1133 = vpack.c.bf16 %v1132, %v1132
    %1135 = vrot.lane.b32.xlu0 %v1133, 32
    %v1136 = vpop.permute.xlu0 %1135
    %v1138 = vsel %vm139, %v1136, 0
    %1140 = vmatpush.bf16.msra.mxu0 0
    %1141 = vmatpush.bf16.msra.mxu0 0
    %1142 = vmatpush.bf16.msra.mxu0 0
    %1143 = vmatpush.bf16.msra.mxu0 0
    %1144 = vmatpush.bf16.msra.mxu0 0
    %1145 = vmatpush.bf16.msra.mxu0 0
    %1146 = vmatpush.bf16.msra.mxu0 %v228
    %1147 = vmatpush.bf16.msra.mxu0 %v227
    %1148 = vmatmul.bf16.gmra.mxu0 %v1138
    %v1149 = vpop.f32.mrf.mxu0
    %v1150 = vadd.f32 %v119, %v1149
    %v1151 = vpop.f32.mrf.mxu0
    %1152 = vdwg.mxu0
    %v1153 = vpack.c.bf16 %v1094, %v1094
    %1155 = vrot.lane.b32.xlu0 %v1153, 32
    %v1156 = vpop.permute.xlu0 %1155
    %v1158 = vsel %vm139, %v1156, 0
    %1160 = vmatpush.bf16.msra.mxu0 0
    %1161 = vmatpush.bf16.msra.mxu0 0
    %1162 = vmatpush.bf16.msra.mxu0 0
    %1163 = vmatpush.bf16.msra.mxu0 0
    %1164 = vmatpush.bf16.msra.mxu0 0
    %1165 = vmatpush.bf16.msra.mxu0 0
    %1166 = vmatpush.bf16.msra.mxu0 %v256
    %1167 = vmatpush.bf16.msra.mxu0 %v255
    %1168 = vmatmul.bf16.gmra.mxu0 %v1158
    %v1169 = vpop.f32.mrf.mxu0
    %v1170 = vadd.f32 0.0, %v1169
    %v1171 = vpop.f32.mrf.mxu0
    %1172 = vdwg.mxu0
    %v1173 = vadd.f32 %v1150, %v1170
    %v1174 = vxor.u32 %v1173, 2147483648
    %v1175 = vmul.f32 %v1174, 1.442695
    %v1176 = vpow.pop %v1175
    %v1177 = vadd.f32 %v1176, 1.0
    %v1178 = vrcp.pop %v1177
    %v1179 = vmul.f32 %v1177, %v1178
    %v1180 = vsub.f32 1.0, %v1179
    %v1181 = vmul.f32 %v1178, %v1180
    %v1182 = vadd.f32 %v1178, %v1181
    %vm1183 = vweird.f32 %v1177
    %vm1184 = vweird.f32 %v1178
    %vm1185 = vmor %vm1183, %vm1184
    %v1186 = vsel %vm1185, %v1178, %v1182
    %v1187 = vand.u32 2147483647, %v1177
    %vm1188 = vcmp.eq.f32.partialorder %v1187, 8.507059e+37
    %v1189 = vand.u32 %v1177, 2147483648
    %v1190 = vor.u32 1.1754944e-38, %v1189
    %v1191 = vsel %vm1188, %v1190, %v1186
    %v1192 = vmul.f32 1.0, %v1191
    %v1193 = vmul.f32 %v1192, 2.0
    %v1194 = vsub.f32 %v1193, 1.0
    %v1195 = vmul.f32 %v1192, %v1126
    %1197 = vrot.lane.b32.xlu0 %v1194, 64
    %v1198 = vpop.permute.xlu0 %1197
    %v1200 = vmul.f32 %v1192, %v1198
    %1202 = vrot.lane.b32.xlu0 %v1200, 32
    %v1203 = vpop.permute.xlu0 %1202
    %v1205 = vadd.f32 %v1195, %v1203
    %v1206 = vtanh.pop %v1205
    %1208 = vrot.lane.b32.xlu0 %v1206, 64
    %v1209 = vpop.permute.xlu0 %1208
    %v1211 = vmul.f32 %v1192, %v1209
    %v1212 = vpack.c.bf16 %v1211, %v1211
    %v1213 = vld [vmem:[%s5] sm:$0xf]
    %v1214 = vld [vmem:[%s5 + $0x4] sm:$0xf]
    %v1215 = vld [vmem:[%s5 + $0x8] sm:$0xf]
    %v1216 = vld [vmem:[%s5 + $0xc] sm:$0xf]
    %v1217 = vld [vmem:[#allocation10] sm:$0xff]
    %1219 = vrot.lane.b32.xlu0 %v1212, 32
    %v1220 = vpop.permute.xlu0 %1219
    %v1225 = vunpack.c.l.b16 %v1213
    %v1226 = vunpack.c.l.b16 %v1214
    %v1227 = vunpack.c.l.b16 %v1215
    %v1228 = vunpack.c.l.b16 %v1216
    %v1229 = vpack.c.b16 %v1226, %v1225
    %v1230 = vpack.c.b16 %v1228, %v1227
    %v1234 = vsel %vm139, %v1220, 0
    %1236 = vmatpush.bf16.msra.mxu0 0
    %1237 = vmatpush.bf16.msra.mxu0 0
    %1238 = vmatpush.bf16.msra.mxu0 0
    %1239 = vmatpush.bf16.msra.mxu0 0
    %1240 = vmatpush.bf16.msra.mxu0 0
    %1241 = vmatpush.bf16.msra.mxu0 0
    %1242 = vmatpush.bf16.msra.mxu0 %v1230
    %1243 = vmatpush.bf16.msra.mxu0 %v1229
    %1244 = vmatmul.bf16.gmra.mxu0 %v1234
    %v1245 = vpop.f32.mrf.mxu0
    %v1246 = vadd.f32 %v1217, %v1245
    %v1247 = vpop.f32.mrf.mxu0
    %1248 = vdwg.mxu0
    %vm1249 = vcmask 64512
    %1250 = vst.msk [vmem:[#allocation11] sm:$0xff] %vm1249, %v1246
    // Predicated region
    $region50: #{tpu_custom_call.1} parent=1 // pred_check
      _
    $region51: #{tpu_custom_call.1} parent=1 // pred_check_branch
      %1252 = sbr.rel (0) target = $region53
    $region52: #{tpu_custom_call.1} parent=1 // pred_region
      %1254 = vsyncadd [#allocation4], 0
      %s1256 = sshll.u32 [#allocation11], 4
      %s1257 = int_to_ptr.vmem [resolvable:$true] %s1256
      %s1258 = sshll.u32 %s7, 4
      %s1259 = int_to_ptr.hbm [resolvable:$true] %s1258
      %1261 = dma.vmem_to_hbm [thread:$0]  %s1257, 128, %s1259, [#allocation4]
    $region53: #{tpu_custom_call.1} parent=1 // pred_fallthru
      _
    // Predicated region
    $region54: #{tpu_custom_call.1} parent=1 // pred_check
      _
    $region55: #{tpu_custom_call.1} parent=1 // pred_check_branch
      %1263 = sbr.rel (0) target = $region57
    $region56: #{tpu_custom_call.1} parent=1 // pred_region
      %1265 = dma.done [#allocation4], 128
    $region57: #{tpu_custom_call.1} parent=1 // pred_fallthru
      _
    %1266 = vsyncpa [#allocation3], 1
    %1267 = vsyncpa [#allocation6], 1
    %1268 = vsyncpa [#allocation9], 1
    %1269 = vsyncpa [#allocation4], 1

</llo_original>
